<compile_context>
chip_gen: v6e
topology: v6e:2x2x1
jax: 0.10.0
libtpu: 0.0.40
codegen_flags: <defaults>
</compile_context>

<pallas_src>
import jax
import jax.numpy as jnp
from jax import lax
from jax.experimental import pallas as pl
from jax.experimental.pallas import tpu as pltpu


def _rr_kernel(params_ref, xs_ref, ys_ref, xq_ref, o_ref, ab_ref):
    M, D = xs_ref.shape
    Nw = o_ref.shape[1]
    f32 = jnp.float32

    lam = params_ref[0]
    alpha = params_ref[1]
    beta = params_ref[2]
    ln10 = jnp.float32(2.302585092994046)

    # --- feature normalization: subtract column mean, scale by 1/||row|| (EUP rsqrt) ---
    xs = xs_ref[...].astype(f32)
    xs = xs - jnp.mean(xs, axis=0, keepdims=True)
    xs = xs * lax.rsqrt(jnp.sum(xs * xs, axis=1, keepdims=True))

    xq = xq_ref[...].astype(f32)
    xq = xq - jnp.mean(xq, axis=0, keepdims=True)
    xq = xq * lax.rsqrt(jnp.sum(xq * xq, axis=1, keepdims=True))

    # --- one-hot labels (F.embedding(Y, eye(N))) ---
    ys = ys_ref[...]                                               # [M, 1] int32
    cls = lax.broadcasted_iota(jnp.int32, (1, Nw), 1)
    ys_onehot = (ys == cls).astype(f32)                            # [M, Nw]

    # --- ridge system A = XS XS^T + 10^lam * I (NT matmul, no transpose) ---
    rows_m = lax.broadcasted_iota(jnp.int32, (M, 1), 0)
    cols_m = lax.broadcasted_iota(jnp.int32, (1, M), 1)
    eye_m = (rows_m == cols_m).astype(f32)
    reg = jnp.exp(lam * ln10)                                      # 10 ** lam
    A = lax.dot_general(xs, xs, (((1,), (1,)), ((), ())),
                        preferred_element_type=f32) + reg * eye_m  # [M, M]

    # --- Gauss-Jordan on [A | Y]: right block becomes B = A^{-1} Y ---
    W_aug = M + Nw
    ab_ref[...] = jnp.concatenate([A, ys_onehot], axis=1)          # [M, M+Nw]
    lane_iota = lax.broadcasted_iota(jnp.int32, (1, W_aug), 1)

    for k in range(M):                                             # static unroll
        col_k = lane_iota == k                                     # [1, W]
        is_k = rows_m == k                                         # [M, 1] (computed once)
        prow = ab_ref[pl.ds(k, 1), :]                              # [1, W] static sublane slice
        piv = jnp.sum(jnp.where(col_k, prow, 0.0),
                      axis=1, keepdims=True)                       # [1, 1] (1-row reduce only)
        prow = prow * pl.reciprocal(piv, approx=False)             # EUP reciprocal
        ab = ab_ref[...]                                           # [M, W]
        colv = jnp.sum(jnp.where(col_k, ab, 0.0),
                       axis=1, keepdims=True)                      # [M, 1] pivot column
        factor = jnp.where(is_k, 0.0, colv)
        ab_ref[...] = jnp.where(is_k, prow, ab - factor * prow)

    B = ab_ref[...][:, M:]                                         # [M, Nw] = A^{-1} Y

    # --- pred = 10^alpha * XQ @ (XS^T B) + beta == 10^alpha * (XQ XS^T) B + beta ---
    S = lax.dot_general(xq, xs, (((1,), (1,)), ((), ())),
                        preferred_element_type=f32)                # [Q, M]
    scale = jnp.exp(alpha * ln10)                                  # 10 ** alpha
    pred = scale * jnp.dot(S, B, preferred_element_type=f32) + beta
    o_ref[...] = pred.astype(o_ref.dtype)


def rr_forward(lam, alpha, beta, XS, YS, XQ, Wd, Wy):
    """Pallas implementation of RR.forward (single-program kernel, all data in VMEM)."""
    xs_full = jnp.concatenate([XS, Wd], axis=0).astype(jnp.float32)         # [M, D]
    ys_full = jnp.concatenate([YS, Wy], axis=0).astype(jnp.int32)[:, None]  # [M, 1]
    M = xs_full.shape[0]
    Q = XQ.shape[0]
    Nw = Wy.shape[0]

    params = jnp.stack([jnp.asarray(lam), jnp.asarray(alpha),
                        jnp.asarray(beta)]).astype(jnp.float32)             # (3,)

    smem = pl.BlockSpec(memory_space=pltpu.MemorySpace.SMEM)
    vmem = pl.BlockSpec(memory_space=pltpu.MemorySpace.VMEM)

    # TODO(synk): when many episodes are evaluated per step, add a leading
    # "parallel" episode grid axis with per-episode BlockSpecs (shards across
    # the two v7x TensorCores and amortizes launch overhead).
    return pl.pallas_call(
        _rr_kernel,
        out_shape=jax.ShapeDtypeStruct((Q, Nw), jnp.float32),
        in_specs=[smem, vmem, vmem, vmem],
        out_specs=vmem,
        scratch_shapes=[pltpu.VMEM((M, M + Nw), jnp.float32)],
    )(params, xs_full, ys_full, XQ.astype(jnp.float32))


def rr_reference(lam, alpha, beta, XS, YS, XQ, Wd, Wy):
    """Pure-JAX reference mirroring the PyTorch forward."""
    xs = jnp.concatenate([XS, Wd], axis=0)
    xs = xs - xs.mean(0)
    xs = xs / jnp.linalg.norm(xs, axis=1, keepdims=True)
    xq = XQ - XQ.mean(0)
    xq = xq / jnp.linalg.norm(xq, axis=1, keepdims=True)
    ys = jnp.concatenate([YS, Wy], axis=0)
    y1 = jax.nn.one_hot(ys, Wy.shape[0], dtype=jnp.float32)
    M = xs.shape[0]
    A = xs @ xs.T + (10.0 ** lam) * jnp.eye(M, dtype=jnp.float32)
    W = xs.T @ jnp.linalg.inv(A) @ y1
    return (10.0 ** alpha) * xq @ W + beta


if __name__ == "__main__":
    N, K, D, Q = 4, 2, 32, 8          # ways, shots, hidden, #queries

    key = jax.random.PRNGKey(0)
    k1, k2, k3 = jax.random.split(key, 3)
    XS = jax.random.normal(k1, (N * K, D), dtype=jnp.float32)
    XQ = jax.random.normal(k2, (Q, D), dtype=jnp.float32)
    Wd = jax.random.normal(k3, (N, D), dtype=jnp.float32)
    YS = jnp.repeat(jnp.arange(N, dtype=jnp.int32), K)        # [N*K]
    Wy = jnp.arange(N, dtype=jnp.int32)                       # buffer Wy from __init__

    # parameters exactly as in RR.__init__
    lam = jnp.float32(-1.0)
    alpha = jnp.float32(0.0)
    beta = jnp.float32(1.0)

    pred = rr_forward(lam, alpha, beta, XS, YS, XQ, Wd, Wy)
    pred = jax.block_until_ready(pred)

    ref = rr_reference(lam, alpha, beta, XS, YS, XQ, Wd, Wy)
    assert pred.shape == (Q, N)
    assert jnp.all(jnp.isfinite(pred))
    assert jnp.allclose(pred, ref, rtol=1e-3, atol=1e-3), (pred, ref)

    print("KERNEL_OK")
</pallas_src>

<mosaic_0001>
module attributes {stable_mosaic.version = 11 : i64} {
  func.func @_rr_kernel(%arg0: memref<3xf32, #tpu.memory_space<smem>>, %arg1: memref<12x32xf32, #tpu.memory_space<vmem>>, %arg2: memref<12x1xi32, #tpu.memory_space<vmem>>, %arg3: memref<8x32xf32, #tpu.memory_space<vmem>>, %arg4: memref<8x4xf32, #tpu.memory_space<vmem>>, %arg5: memref<12x16xf32, #tpu.memory_space<vmem>>) attributes {dimension_semantics = [], scalar_prefetch = 0 : i64, scratch_operands = 1 : i64, tpu.core_type = #tpu.core_type<tc>} {
    %c0 = arith.constant 0 : index
    %0 = memref.load %arg0[%c0] : memref<3xf32, #tpu.memory_space<smem>>
    %c1 = arith.constant 1 : index
    %1 = memref.load %arg0[%c1] : memref<3xf32, #tpu.memory_space<smem>>
    %c2 = arith.constant 2 : index
    %2 = memref.load %arg0[%c2] : memref<3xf32, #tpu.memory_space<smem>>
    %c0_0 = arith.constant 0 : index
    %c0_1 = arith.constant 0 : index
    %3 = vector.load %arg1[%c0_0, %c0_1] : memref<12x32xf32, #tpu.memory_space<vmem>>, vector<12x32xf32>
    %cst = arith.constant dense<0.000000e+00> : vector<32xf32>
    %4 = vector.multi_reduction <add>, %3, %cst [0] : vector<12x32xf32> to vector<32xf32>
    %5 = vector.shape_cast %4 : vector<32xf32> to vector<1x32xf32>
    %cst_2 = arith.constant 1.200000e+01 : f32
    %6 = vector.broadcast %cst_2 : f32 to vector<1x32xf32>
    %7 = arith.divf %5, %6 : vector<1x32xf32>
    %8 = vector.broadcast %7 : vector<1x32xf32> to vector<12x32xf32>
    %9 = arith.subf %3, %8 : vector<12x32xf32>
    %10 = arith.mulf %9, %9 : vector<12x32xf32>
    %cst_3 = arith.constant dense<0.000000e+00> : vector<12xf32>
    %11 = vector.multi_reduction <add>, %10, %cst_3 [1] : vector<12x32xf32> to vector<12xf32>
    %12 = vector.shape_cast %11 : vector<12xf32> to vector<12x1xf32>
    %13 = math.rsqrt %12 : vector<12x1xf32>
    %14 = vector.broadcast %13 : vector<12x1xf32> to vector<12x32xf32>
    %15 = arith.mulf %9, %14 : vector<12x32xf32>
    %c0_4 = arith.constant 0 : index
    %c0_5 = arith.constant 0 : index
    %16 = vector.load %arg3[%c0_4, %c0_5] : memref<8x32xf32, #tpu.memory_space<vmem>>, vector<8x32xf32>
    %cst_6 = arith.constant dense<0.000000e+00> : vector<32xf32>
    %17 = vector.multi_reduction <add>, %16, %cst_6 [0] : vector<8x32xf32> to vector<32xf32>
    %18 = vector.shape_cast %17 : vector<32xf32> to vector<1x32xf32>
    %cst_7 = arith.constant 8.000000e+00 : f32
    %19 = vector.broadcast %cst_7 : f32 to vector<1x32xf32>
    %20 = arith.divf %18, %19 : vector<1x32xf32>
    %21 = vector.broadcast %20 : vector<1x32xf32> to vector<8x32xf32>
    %22 = arith.subf %16, %21 : vector<8x32xf32>
    %23 = arith.mulf %22, %22 : vector<8x32xf32>
    %cst_8 = arith.constant dense<0.000000e+00> : vector<8xf32>
    %24 = vector.multi_reduction <add>, %23, %cst_8 [1] : vector<8x32xf32> to vector<8xf32>
    %25 = vector.shape_cast %24 : vector<8xf32> to vector<8x1xf32>
    %26 = math.rsqrt %25 : vector<8x1xf32>
    %27 = vector.broadcast %26 : vector<8x1xf32> to vector<8x32xf32>
    %28 = arith.mulf %22, %27 : vector<8x32xf32>
    %c0_9 = arith.constant 0 : index
    %c0_10 = arith.constant 0 : index
    %29 = vector.load %arg2[%c0_9, %c0_10] : memref<12x1xi32, #tpu.memory_space<vmem>>, vector<12x1xi32>
    %30 = tpu.iota {dimensions = array<i32: 1>} : vector<1x4xi32>
    %31 = vector.broadcast %29 : vector<12x1xi32> to vector<12x4xi32>
    %32 = vector.broadcast %30 : vector<1x4xi32> to vector<12x4xi32>
    %33 = arith.cmpi eq, %31, %32 : vector<12x4xi32>
    %34 = arith.extui %33 : vector<12x4xi1> to vector<12x4xi32>
    %35 = arith.sitofp %34 : vector<12x4xi32> to vector<12x4xf32>
    %36 = tpu.iota {dimensions = array<i32: 0>} : vector<12x1xi32>
    %37 = tpu.iota {dimensions = array<i32: 1>} : vector<1x12xi32>
    %38 = vector.broadcast %36 : vector<12x1xi32> to vector<12x12xi32>
    %39 = vector.broadcast %37 : vector<1x12xi32> to vector<12x12xi32>
    %40 = arith.cmpi eq, %38, %39 : vector<12x12xi32>
    %41 = arith.extui %40 : vector<12x12xi1> to vector<12x12xi32>
    %42 = arith.sitofp %41 : vector<12x12xi32> to vector<12x12xf32>
    %cst_11 = arith.constant 2.30258512 : f32
    %43 = arith.mulf %0, %cst_11 : f32
    %44 = math.exp %43 : f32
    %cst_12 = arith.constant dense<0.000000e+00> : vector<12x12xf32>
    %45 = tpu.matmul %15, %15, %cst_12 {dimension_numbers = #tpu.dot_dimension_numbers<[1], [1], [0], [0], [0, 0, 1, 0], [], []>} : vector<12x32xf32>, vector<12x32xf32>, vector<12x12xf32> -> vector<12x12xf32>
    %46 = vector.broadcast %44 : f32 to vector<12x12xf32>
    %47 = arith.mulf %46, %42 : vector<12x12xf32>
    %48 = arith.addf %45, %47 : vector<12x12xf32>
    %49 = tpu.concatenate %48, %35 in 1 : vector<12x12xf32>, vector<12x4xf32> -> vector<12x16xf32>
    %c0_13 = arith.constant 0 : index
    %c0_14 = arith.constant 0 : index
    %50 = vector.load %arg5[%c0_13, %c0_14] : memref<12x16xf32, #tpu.memory_space<vmem>>, vector<12x16xf32>
    tpu.vector_store %arg5[%c0_13, %c0_14], %49 {strides = array<i32>} : memref<12x16xf32, #tpu.memory_space<vmem>>, vector<12x16xf32>,
    %51 = tpu.iota {dimensions = array<i32: 1>} : vector<1x16xi32>
    %c0_i32 = arith.constant 0 : i32
    %52 = vector.broadcast %c0_i32 : i32 to vector<1x16xi32>
    %53 = arith.cmpi eq, %51, %52 : vector<1x16xi32>
    %c0_i32_15 = arith.constant 0 : i32
    %54 = vector.broadcast %c0_i32_15 : i32 to vector<12x1xi32>
    %55 = arith.cmpi eq, %36, %54 : vector<12x1xi32>
    %c0_16 = arith.constant 0 : index
    %c0_17 = arith.constant 0 : index
    %56 = vector.load %arg5[%c0_16, %c0_17] : memref<12x16xf32, #tpu.memory_space<vmem>>, vector<1x16xf32>
    %cst_18 = arith.constant 0.000000e+00 : f32
    %57 = vector.broadcast %cst_18 : f32 to vector<1x16xf32>
    %58 = arith.select %53, %56, %57 : vector<1x16xi1>, vector<1x16xf32>
    %cst_19 = arith.constant dense<0.000000e+00> : vector<1xf32>
    %59 = vector.multi_reduction <add>, %58, %cst_19 [1] : vector<1x16xf32> to vector<1xf32>
    %60 = vector.shape_cast %59 : vector<1xf32> to vector<1x1xf32>
    %61 = tpu.reciprocal %60 : vector<1x1xf32> -> vector<1x1xf32>
    %62 = vector.broadcast %61 : vector<1x1xf32> to vector<1x16xf32>
    %63 = arith.mulf %56, %62 : vector<1x16xf32>
    %c0_20 = arith.constant 0 : index
    %c0_21 = arith.constant 0 : index
    %64 = vector.load %arg5[%c0_20, %c0_21] : memref<12x16xf32, #tpu.memory_space<vmem>>, vector<12x16xf32>
    %cst_22 = arith.constant 0.000000e+00 : f32
    %65 = vector.shape_cast %53 : vector<1x16xi1> to vector<1x16xi1>
    %66 = vector.broadcast %65 : vector<1x16xi1> to vector<12x16xi1>
    %67 = vector.broadcast %cst_22 : f32 to vector<12x16xf32>
    %68 = arith.select %66, %64, %67 : vector<12x16xi1>, vector<12x16xf32>
    %cst_23 = arith.constant dense<0.000000e+00> : vector<12xf32>
    %69 = vector.multi_reduction <add>, %68, %cst_23 [1] : vector<12x16xf32> to vector<12xf32>
    %70 = vector.shape_cast %69 : vector<12xf32> to vector<12x1xf32>
    %cst_24 = arith.constant 0.000000e+00 : f32
    %71 = vector.broadcast %cst_24 : f32 to vector<12x1xf32>
    %72 = arith.select %55, %71, %70 : vector<12x1xi1>, vector<12x1xf32>
    %73 = vector.broadcast %72 : vector<12x1xf32> to vector<12x16xf32>
    %74 = vector.broadcast %63 : vector<1x16xf32> to vector<12x16xf32>
    %75 = arith.mulf %73, %74 : vector<12x16xf32>
    %76 = arith.subf %64, %75 : vector<12x16xf32>
    %77 = vector.shape_cast %55 : vector<12x1xi1> to vector<12x1xi1>
    %78 = vector.broadcast %77 : vector<12x1xi1> to vector<12x16xi1>
    %79 = vector.shape_cast %63 : vector<1x16xf32> to vector<1x16xf32>
    %80 = vector.broadcast %79 : vector<1x16xf32> to vector<12x16xf32>
    %81 = arith.select %78, %80, %76 : vector<12x16xi1>, vector<12x16xf32>
    %c0_25 = arith.constant 0 : index
    %c0_26 = arith.constant 0 : index
    %82 = vector.load %arg5[%c0_25, %c0_26] : memref<12x16xf32, #tpu.memory_space<vmem>>, vector<12x16xf32>
    tpu.vector_store %arg5[%c0_25, %c0_26], %81 {strides = array<i32>} : memref<12x16xf32, #tpu.memory_space<vmem>>, vector<12x16xf32>,
    %c1_i32 = arith.constant 1 : i32
    %83 = vector.broadcast %c1_i32 : i32 to vector<1x16xi32>
    %84 = arith.cmpi eq, %51, %83 : vector<1x16xi32>
    %c1_i32_27 = arith.constant 1 : i32
    %85 = vector.broadcast %c1_i32_27 : i32 to vector<12x1xi32>
    %86 = arith.cmpi eq, %36, %85 : vector<12x1xi32>
    %c1_28 = arith.constant 1 : index
    %c0_29 = arith.constant 0 : index
    %87 = vector.load %arg5[%c1_28, %c0_29] : memref<12x16xf32, #tpu.memory_space<vmem>>, vector<1x16xf32>
    %cst_30 = arith.constant 0.000000e+00 : f32
    %88 = vector.broadcast %cst_30 : f32 to vector<1x16xf32>
    %89 = arith.select %84, %87, %88 : vector<1x16xi1>, vector<1x16xf32>
    %cst_31 = arith.constant dense<0.000000e+00> : vector<1xf32>
    %90 = vector.multi_reduction <add>, %89, %cst_31 [1] : vector<1x16xf32> to vector<1xf32>
    %91 = vector.shape_cast %90 : vector<1xf32> to vector<1x1xf32>
    %92 = tpu.reciprocal %91 : vector<1x1xf32> -> vector<1x1xf32>
    %93 = vector.broadcast %92 : vector<1x1xf32> to vector<1x16xf32>
    %94 = arith.mulf %87, %93 : vector<1x16xf32>
    %c0_32 = arith.constant 0 : index
    %c0_33 = arith.constant 0 : index
    %95 = vector.load %arg5[%c0_32, %c0_33] : memref<12x16xf32, #tpu.memory_space<vmem>>, vector<12x16xf32>
    %cst_34 = arith.constant 0.000000e+00 : f32
    %96 = vector.shape_cast %84 : vector<1x16xi1> to vector<1x16xi1>
    %97 = vector.broadcast %96 : vector<1x16xi1> to vector<12x16xi1>
    %98 = vector.broadcast %cst_34 : f32 to vector<12x16xf32>
    %99 = arith.select %97, %95, %98 : vector<12x16xi1>, vector<12x16xf32>
    %cst_35 = arith.constant dense<0.000000e+00> : vector<12xf32>
    %100 = vector.multi_reduction <add>, %99, %cst_35 [1] : vector<12x16xf32> to vector<12xf32>
    %101 = vector.shape_cast %100 : vector<12xf32> to vector<12x1xf32>
    %cst_36 = arith.constant 0.000000e+00 : f32
    %102 = vector.broadcast %cst_36 : f32 to vector<12x1xf32>
    %103 = arith.select %86, %102, %101 : vector<12x1xi1>, vector<12x1xf32>
    %104 = vector.broadcast %103 : vector<12x1xf32> to vector<12x16xf32>
    %105 = vector.broadcast %94 : vector<1x16xf32> to vector<12x16xf32>
    %106 = arith.mulf %104, %105 : vector<12x16xf32>
    %107 = arith.subf %95, %106 : vector<12x16xf32>
    %108 = vector.shape_cast %86 : vector<12x1xi1> to vector<12x1xi1>
    %109 = vector.broadcast %108 : vector<12x1xi1> to vector<12x16xi1>
    %110 = vector.shape_cast %94 : vector<1x16xf32> to vector<1x16xf32>
    %111 = vector.broadcast %110 : vector<1x16xf32> to vector<12x16xf32>
    %112 = arith.select %109, %111, %107 : vector<12x16xi1>, vector<12x16xf32>
    %c0_37 = arith.constant 0 : index
    %c0_38 = arith.constant 0 : index
    %113 = vector.load %arg5[%c0_37, %c0_38] : memref<12x16xf32, #tpu.memory_space<vmem>>, vector<12x16xf32>
    tpu.vector_store %arg5[%c0_37, %c0_38], %112 {strides = array<i32>} : memref<12x16xf32, #tpu.memory_space<vmem>>, vector<12x16xf32>,
    %c2_i32 = arith.constant 2 : i32
    %114 = vector.broadcast %c2_i32 : i32 to vector<1x16xi32>
    %115 = arith.cmpi eq, %51, %114 : vector<1x16xi32>
    %c2_i32_39 = arith.constant 2 : i32
    %116 = vector.broadcast %c2_i32_39 : i32 to vector<12x1xi32>
    %117 = arith.cmpi eq, %36, %116 : vector<12x1xi32>
    %c2_40 = arith.constant 2 : index
    %c0_41 = arith.constant 0 : index
    %118 = vector.load %arg5[%c2_40, %c0_41] : memref<12x16xf32, #tpu.memory_space<vmem>>, vector<1x16xf32>
    %cst_42 = arith.constant 0.000000e+00 : f32
    %119 = vector.broadcast %cst_42 : f32 to vector<1x16xf32>
    %120 = arith.select %115, %118, %119 : vector<1x16xi1>, vector<1x16xf32>
    %cst_43 = arith.constant dense<0.000000e+00> : vector<1xf32>
    %121 = vector.multi_reduction <add>, %120, %cst_43 [1] : vector<1x16xf32> to vector<1xf32>
    %122 = vector.shape_cast %121 : vector<1xf32> to vector<1x1xf32>
    %123 = tpu.reciprocal %122 : vector<1x1xf32> -> vector<1x1xf32>
    %124 = vector.broadcast %123 : vector<1x1xf32> to vector<1x16xf32>
    %125 = arith.mulf %118, %124 : vector<1x16xf32>
    %c0_44 = arith.constant 0 : index
    %c0_45 = arith.constant 0 : index
    %126 = vector.load %arg5[%c0_44, %c0_45] : memref<12x16xf32, #tpu.memory_space<vmem>>, vector<12x16xf32>
    %cst_46 = arith.constant 0.000000e+00 : f32
    %127 = vector.shape_cast %115 : vector<1x16xi1> to vector<1x16xi1>
    %128 = vector.broadcast %127 : vector<1x16xi1> to vector<12x16xi1>
    %129 = vector.broadcast %cst_46 : f32 to vector<12x16xf32>
    %130 = arith.select %128, %126, %129 : vector<12x16xi1>, vector<12x16xf32>
    %cst_47 = arith.constant dense<0.000000e+00> : vector<12xf32>
    %131 = vector.multi_reduction <add>, %130, %cst_47 [1] : vector<12x16xf32> to vector<12xf32>
    %132 = vector.shape_cast %131 : vector<12xf32> to vector<12x1xf32>
    %cst_48 = arith.constant 0.000000e+00 : f32
    %133 = vector.broadcast %cst_48 : f32 to vector<12x1xf32>
    %134 = arith.select %117, %133, %132 : vector<12x1xi1>, vector<12x1xf32>
    %135 = vector.broadcast %134 : vector<12x1xf32> to vector<12x16xf32>
    %136 = vector.broadcast %125 : vector<1x16xf32> to vector<12x16xf32>
    %137 = arith.mulf %135, %136 : vector<12x16xf32>
    %138 = arith.subf %126, %137 : vector<12x16xf32>
    %139 = vector.shape_cast %117 : vector<12x1xi1> to vector<12x1xi1>
    %140 = vector.broadcast %139 : vector<12x1xi1> to vector<12x16xi1>
    %141 = vector.shape_cast %125 : vector<1x16xf32> to vector<1x16xf32>
    %142 = vector.broadcast %141 : vector<1x16xf32> to vector<12x16xf32>
    %143 = arith.select %140, %142, %138 : vector<12x16xi1>, vector<12x16xf32>
    %c0_49 = arith.constant 0 : index
    %c0_50 = arith.constant 0 : index
    %144 = vector.load %arg5[%c0_49, %c0_50] : memref<12x16xf32, #tpu.memory_space<vmem>>, vector<12x16xf32>
    tpu.vector_store %arg5[%c0_49, %c0_50], %143 {strides = array<i32>} : memref<12x16xf32, #tpu.memory_space<vmem>>, vector<12x16xf32>,
    %c3_i32 = arith.constant 3 : i32
    %145 = vector.broadcast %c3_i32 : i32 to vector<1x16xi32>
    %146 = arith.cmpi eq, %51, %145 : vector<1x16xi32>
    %c3_i32_51 = arith.constant 3 : i32
    %147 = vector.broadcast %c3_i32_51 : i32 to vector<12x1xi32>
    %148 = arith.cmpi eq, %36, %147 : vector<12x1xi32>
    %c3 = arith.constant 3 : index
    %c0_52 = arith.constant 0 : index
    %149 = vector.load %arg5[%c3, %c0_52] : memref<12x16xf32, #tpu.memory_space<vmem>>, vector<1x16xf32>
    %cst_53 = arith.constant 0.000000e+00 : f32
    %150 = vector.broadcast %cst_53 : f32 to vector<1x16xf32>
    %151 = arith.select %146, %149, %150 : vector<1x16xi1>, vector<1x16xf32>
    %cst_54 = arith.constant dense<0.000000e+00> : vector<1xf32>
    %152 = vector.multi_reduction <add>, %151, %cst_54 [1] : vector<1x16xf32> to vector<1xf32>
    %153 = vector.shape_cast %152 : vector<1xf32> to vector<1x1xf32>
    %154 = tpu.reciprocal %153 : vector<1x1xf32> -> vector<1x1xf32>
    %155 = vector.broadcast %154 : vector<1x1xf32> to vector<1x16xf32>
    %156 = arith.mulf %149, %155 : vector<1x16xf32>
    %c0_55 = arith.constant 0 : index
    %c0_56 = arith.constant 0 : index
    %157 = vector.load %arg5[%c0_55, %c0_56] : memref<12x16xf32, #tpu.memory_space<vmem>>, vector<12x16xf32>
    %cst_57 = arith.constant 0.000000e+00 : f32
    %158 = vector.shape_cast %146 : vector<1x16xi1> to vector<1x16xi1>
    %159 = vector.broadcast %158 : vector<1x16xi1> to vector<12x16xi1>
    %160 = vector.broadcast %cst_57 : f32 to vector<12x16xf32>
    %161 = arith.select %159, %157, %160 : vector<12x16xi1>, vector<12x16xf32>
    %cst_58 = arith.constant dense<0.000000e+00> : vector<12xf32>
    %162 = vector.multi_reduction <add>, %161, %cst_58 [1] : vector<12x16xf32> to vector<12xf32>
    %163 = vector.shape_cast %162 : vector<12xf32> to vector<12x1xf32>
    %cst_59 = arith.constant 0.000000e+00 : f32
    %164 = vector.broadcast %cst_59 : f32 to vector<12x1xf32>
    %165 = arith.select %148, %164, %163 : vector<12x1xi1>, vector<12x1xf32>
    %166 = vector.broadcast %165 : vector<12x1xf32> to vector<12x16xf32>
    %167 = vector.broadcast %156 : vector<1x16xf32> to vector<12x16xf32>
    %168 = arith.mulf %166, %167 : vector<12x16xf32>
    %169 = arith.subf %157, %168 : vector<12x16xf32>
    %170 = vector.shape_cast %148 : vector<12x1xi1> to vector<12x1xi1>
    %171 = vector.broadcast %170 : vector<12x1xi1> to vector<12x16xi1>
    %172 = vector.shape_cast %156 : vector<1x16xf32> to vector<1x16xf32>
    %173 = vector.broadcast %172 : vector<1x16xf32> to vector<12x16xf32>
    %174 = arith.select %171, %173, %169 : vector<12x16xi1>, vector<12x16xf32>
    %c0_60 = arith.constant 0 : index
    %c0_61 = arith.constant 0 : index
    %175 = vector.load %arg5[%c0_60, %c0_61] : memref<12x16xf32, #tpu.memory_space<vmem>>, vector<12x16xf32>
    tpu.vector_store %arg5[%c0_60, %c0_61], %174 {strides = array<i32>} : memref<12x16xf32, #tpu.memory_space<vmem>>, vector<12x16xf32>,
    %c4_i32 = arith.constant 4 : i32
    %176 = vector.broadcast %c4_i32 : i32 to vector<1x16xi32>
    %177 = arith.cmpi eq, %51, %176 : vector<1x16xi32>
    %c4_i32_62 = arith.constant 4 : i32
    %178 = vector.broadcast %c4_i32_62 : i32 to vector<12x1xi32>
    %179 = arith.cmpi eq, %36, %178 : vector<12x1xi32>
    %c4 = arith.constant 4 : index
    %c0_63 = arith.constant 0 : index
    %180 = vector.load %arg5[%c4, %c0_63] : memref<12x16xf32, #tpu.memory_space<vmem>>, vector<1x16xf32>
    %cst_64 = arith.constant 0.000000e+00 : f32
    %181 = vector.broadcast %cst_64 : f32 to vector<1x16xf32>
    %182 = arith.select %177, %180, %181 : vector<1x16xi1>, vector<1x16xf32>
    %cst_65 = arith.constant dense<0.000000e+00> : vector<1xf32>
    %183 = vector.multi_reduction <add>, %182, %cst_65 [1] : vector<1x16xf32> to vector<1xf32>
    %184 = vector.shape_cast %183 : vector<1xf32> to vector<1x1xf32>
    %185 = tpu.reciprocal %184 : vector<1x1xf32> -> vector<1x1xf32>
    %186 = vector.broadcast %185 : vector<1x1xf32> to vector<1x16xf32>
    %187 = arith.mulf %180, %186 : vector<1x16xf32>
    %c0_66 = arith.constant 0 : index
    %c0_67 = arith.constant 0 : index
    %188 = vector.load %arg5[%c0_66, %c0_67] : memref<12x16xf32, #tpu.memory_space<vmem>>, vector<12x16xf32>
    %cst_68 = arith.constant 0.000000e+00 : f32
    %189 = vector.shape_cast %177 : vector<1x16xi1> to vector<1x16xi1>
    %190 = vector.broadcast %189 : vector<1x16xi1> to vector<12x16xi1>
    %191 = vector.broadcast %cst_68 : f32 to vector<12x16xf32>
    %192 = arith.select %190, %188, %191 : vector<12x16xi1>, vector<12x16xf32>
    %cst_69 = arith.constant dense<0.000000e+00> : vector<12xf32>
    %193 = vector.multi_reduction <add>, %192, %cst_69 [1] : vector<12x16xf32> to vector<12xf32>
    %194 = vector.shape_cast %193 : vector<12xf32> to vector<12x1xf32>
    %cst_70 = arith.constant 0.000000e+00 : f32
    %195 = vector.broadcast %cst_70 : f32 to vector<12x1xf32>
    %196 = arith.select %179, %195, %194 : vector<12x1xi1>, vector<12x1xf32>
    %197 = vector.broadcast %196 : vector<12x1xf32> to vector<12x16xf32>
    %198 = vector.broadcast %187 : vector<1x16xf32> to vector<12x16xf32>
    %199 = arith.mulf %197, %198 : vector<12x16xf32>
    %200 = arith.subf %188, %199 : vector<12x16xf32>
    %201 = vector.shape_cast %179 : vector<12x1xi1> to vector<12x1xi1>
    %202 = vector.broadcast %201 : vector<12x1xi1> to vector<12x16xi1>
    %203 = vector.shape_cast %187 : vector<1x16xf32> to vector<1x16xf32>
    %204 = vector.broadcast %203 : vector<1x16xf32> to vector<12x16xf32>
    %205 = arith.select %202, %204, %200 : vector<12x16xi1>, vector<12x16xf32>
    %c0_71 = arith.constant 0 : index
    %c0_72 = arith.constant 0 : index
    %206 = vector.load %arg5[%c0_71, %c0_72] : memref<12x16xf32, #tpu.memory_space<vmem>>, vector<12x16xf32>
    tpu.vector_store %arg5[%c0_71, %c0_72], %205 {strides = array<i32>} : memref<12x16xf32, #tpu.memory_space<vmem>>, vector<12x16xf32>,
    %c5_i32 = arith.constant 5 : i32
    %207 = vector.broadcast %c5_i32 : i32 to vector<1x16xi32>
    %208 = arith.cmpi eq, %51, %207 : vector<1x16xi32>
    %c5_i32_73 = arith.constant 5 : i32
    %209 = vector.broadcast %c5_i32_73 : i32 to vector<12x1xi32>
    %210 = arith.cmpi eq, %36, %209 : vector<12x1xi32>
    %c5 = arith.constant 5 : index
    %c0_74 = arith.constant 0 : index
    %211 = vector.load %arg5[%c5, %c0_74] : memref<12x16xf32, #tpu.memory_space<vmem>>, vector<1x16xf32>
    %cst_75 = arith.constant 0.000000e+00 : f32
    %212 = vector.broadcast %cst_75 : f32 to vector<1x16xf32>
    %213 = arith.select %208, %211, %212 : vector<1x16xi1>, vector<1x16xf32>
    %cst_76 = arith.constant dense<0.000000e+00> : vector<1xf32>
    %214 = vector.multi_reduction <add>, %213, %cst_76 [1] : vector<1x16xf32> to vector<1xf32>
    %215 = vector.shape_cast %214 : vector<1xf32> to vector<1x1xf32>
    %216 = tpu.reciprocal %215 : vector<1x1xf32> -> vector<1x1xf32>
    %217 = vector.broadcast %216 : vector<1x1xf32> to vector<1x16xf32>
    %218 = arith.mulf %211, %217 : vector<1x16xf32>
    %c0_77 = arith.constant 0 : index
    %c0_78 = arith.constant 0 : index
    %219 = vector.load %arg5[%c0_77, %c0_78] : memref<12x16xf32, #tpu.memory_space<vmem>>, vector<12x16xf32>
    %cst_79 = arith.constant 0.000000e+00 : f32
    %220 = vector.shape_cast %208 : vector<1x16xi1> to vector<1x16xi1>
    %221 = vector.broadcast %220 : vector<1x16xi1> to vector<12x16xi1>
    %222 = vector.broadcast %cst_79 : f32 to vector<12x16xf32>
    %223 = arith.select %221, %219, %222 : vector<12x16xi1>, vector<12x16xf32>
    %cst_80 = arith.constant dense<0.000000e+00> : vector<12xf32>
    %224 = vector.multi_reduction <add>, %223, %cst_80 [1] : vector<12x16xf32> to vector<12xf32>
    %225 = vector.shape_cast %224 : vector<12xf32> to vector<12x1xf32>
    %cst_81 = arith.constant 0.000000e+00 : f32
    %226 = vector.broadcast %cst_81 : f32 to vector<12x1xf32>
    %227 = arith.select %210, %226, %225 : vector<12x1xi1>, vector<12x1xf32>
    %228 = vector.broadcast %227 : vector<12x1xf32> to vector<12x16xf32>
    %229 = vector.broadcast %218 : vector<1x16xf32> to vector<12x16xf32>
    %230 = arith.mulf %228, %229 : vector<12x16xf32>
    %231 = arith.subf %219, %230 : vector<12x16xf32>
    %232 = vector.shape_cast %210 : vector<12x1xi1> to vector<12x1xi1>
    %233 = vector.broadcast %232 : vector<12x1xi1> to vector<12x16xi1>
    %234 = vector.shape_cast %218 : vector<1x16xf32> to vector<1x16xf32>
    %235 = vector.broadcast %234 : vector<1x16xf32> to vector<12x16xf32>
    %236 = arith.select %233, %235, %231 : vector<12x16xi1>, vector<12x16xf32>
    %c0_82 = arith.constant 0 : index
    %c0_83 = arith.constant 0 : index
    %237 = vector.load %arg5[%c0_82, %c0_83] : memref<12x16xf32, #tpu.memory_space<vmem>>, vector<12x16xf32>
    tpu.vector_store %arg5[%c0_82, %c0_83], %236 {strides = array<i32>} : memref<12x16xf32, #tpu.memory_space<vmem>>, vector<12x16xf32>,
    %c6_i32 = arith.constant 6 : i32
    %238 = vector.broadcast %c6_i32 : i32 to vector<1x16xi32>
    %239 = arith.cmpi eq, %51, %238 : vector<1x16xi32>
    %c6_i32_84 = arith.constant 6 : i32
    %240 = vector.broadcast %c6_i32_84 : i32 to vector<12x1xi32>
    %241 = arith.cmpi eq, %36, %240 : vector<12x1xi32>
    %c6 = arith.constant 6 : index
    %c0_85 = arith.constant 0 : index
    %242 = vector.load %arg5[%c6, %c0_85] : memref<12x16xf32, #tpu.memory_space<vmem>>, vector<1x16xf32>
    %cst_86 = arith.constant 0.000000e+00 : f32
    %243 = vector.broadcast %cst_86 : f32 to vector<1x16xf32>
    %244 = arith.select %239, %242, %243 : vector<1x16xi1>, vector<1x16xf32>
    %cst_87 = arith.constant dense<0.000000e+00> : vector<1xf32>
    %245 = vector.multi_reduction <add>, %244, %cst_87 [1] : vector<1x16xf32> to vector<1xf32>
    %246 = vector.shape_cast %245 : vector<1xf32> to vector<1x1xf32>
    %247 = tpu.reciprocal %246 : vector<1x1xf32> -> vector<1x1xf32>
    %248 = vector.broadcast %247 : vector<1x1xf32> to vector<1x16xf32>
    %249 = arith.mulf %242, %248 : vector<1x16xf32>
    %c0_88 = arith.constant 0 : index
    %c0_89 = arith.constant 0 : index
    %250 = vector.load %arg5[%c0_88, %c0_89] : memref<12x16xf32, #tpu.memory_space<vmem>>, vector<12x16xf32>
    %cst_90 = arith.constant 0.000000e+00 : f32
    %251 = vector.shape_cast %239 : vector<1x16xi1> to vector<1x16xi1>
    %252 = vector.broadcast %251 : vector<1x16xi1> to vector<12x16xi1>
    %253 = vector.broadcast %cst_90 : f32 to vector<12x16xf32>
    %254 = arith.select %252, %250, %253 : vector<12x16xi1>, vector<12x16xf32>
    %cst_91 = arith.constant dense<0.000000e+00> : vector<12xf32>
    %255 = vector.multi_reduction <add>, %254, %cst_91 [1] : vector<12x16xf32> to vector<12xf32>
    %256 = vector.shape_cast %255 : vector<12xf32> to vector<12x1xf32>
    %cst_92 = arith.constant 0.000000e+00 : f32
    %257 = vector.broadcast %cst_92 : f32 to vector<12x1xf32>
    %258 = arith.select %241, %257, %256 : vector<12x1xi1>, vector<12x1xf32>
    %259 = vector.broadcast %258 : vector<12x1xf32> to vector<12x16xf32>
    %260 = vector.broadcast %249 : vector<1x16xf32> to vector<12x16xf32>
    %261 = arith.mulf %259, %260 : vector<12x16xf32>
    %262 = arith.subf %250, %261 : vector<12x16xf32>
    %263 = vector.shape_cast %241 : vector<12x1xi1> to vector<12x1xi1>
    %264 = vector.broadcast %263 : vector<12x1xi1> to vector<12x16xi1>
    %265 = vector.shape_cast %249 : vector<1x16xf32> to vector<1x16xf32>
    %266 = vector.broadcast %265 : vector<1x16xf32> to vector<12x16xf32>
    %267 = arith.select %264, %266, %262 : vector<12x16xi1>, vector<12x16xf32>
    %c0_93 = arith.constant 0 : index
    %c0_94 = arith.constant 0 : index
    %268 = vector.load %arg5[%c0_93, %c0_94] : memref<12x16xf32, #tpu.memory_space<vmem>>, vector<12x16xf32>
    tpu.vector_store %arg5[%c0_93, %c0_94], %267 {strides = array<i32>} : memref<12x16xf32, #tpu.memory_space<vmem>>, vector<12x16xf32>,
    %c7_i32 = arith.constant 7 : i32
    %269 = vector.broadcast %c7_i32 : i32 to vector<1x16xi32>
    %270 = arith.cmpi eq, %51, %269 : vector<1x16xi32>
    %c7_i32_95 = arith.constant 7 : i32
    %271 = vector.broadcast %c7_i32_95 : i32 to vector<12x1xi32>
    %272 = arith.cmpi eq, %36, %271 : vector<12x1xi32>
    %c7 = arith.constant 7 : index
    %c0_96 = arith.constant 0 : index
    %273 = vector.load %arg5[%c7, %c0_96] : memref<12x16xf32, #tpu.memory_space<vmem>>, vector<1x16xf32>
    %cst_97 = arith.constant 0.000000e+00 : f32
    %274 = vector.broadcast %cst_97 : f32 to vector<1x16xf32>
    %275 = arith.select %270, %273, %274 : vector<1x16xi1>, vector<1x16xf32>
    %cst_98 = arith.constant dense<0.000000e+00> : vector<1xf32>
    %276 = vector.multi_reduction <add>, %275, %cst_98 [1] : vector<1x16xf32> to vector<1xf32>
    %277 = vector.shape_cast %276 : vector<1xf32> to vector<1x1xf32>
    %278 = tpu.reciprocal %277 : vector<1x1xf32> -> vector<1x1xf32>
    %279 = vector.broadcast %278 : vector<1x1xf32> to vector<1x16xf32>
    %280 = arith.mulf %273, %279 : vector<1x16xf32>
    %c0_99 = arith.constant 0 : index
    %c0_100 = arith.constant 0 : index
    %281 = vector.load %arg5[%c0_99, %c0_100] : memref<12x16xf32, #tpu.memory_space<vmem>>, vector<12x16xf32>
    %cst_101 = arith.constant 0.000000e+00 : f32
    %282 = vector.shape_cast %270 : vector<1x16xi1> to vector<1x16xi1>
    %283 = vector.broadcast %282 : vector<1x16xi1> to vector<12x16xi1>
    %284 = vector.broadcast %cst_101 : f32 to vector<12x16xf32>
    %285 = arith.select %283, %281, %284 : vector<12x16xi1>, vector<12x16xf32>
    %cst_102 = arith.constant dense<0.000000e+00> : vector<12xf32>
    %286 = vector.multi_reduction <add>, %285, %cst_102 [1] : vector<12x16xf32> to vector<12xf32>
    %287 = vector.shape_cast %286 : vector<12xf32> to vector<12x1xf32>
    %cst_103 = arith.constant 0.000000e+00 : f32
    %288 = vector.broadcast %cst_103 : f32 to vector<12x1xf32>
    %289 = arith.select %272, %288, %287 : vector<12x1xi1>, vector<12x1xf32>
    %290 = vector.broadcast %289 : vector<12x1xf32> to vector<12x16xf32>
    %291 = vector.broadcast %280 : vector<1x16xf32> to vector<12x16xf32>
    %292 = arith.mulf %290, %291 : vector<12x16xf32>
    %293 = arith.subf %281, %292 : vector<12x16xf32>
    %294 = vector.shape_cast %272 : vector<12x1xi1> to vector<12x1xi1>
    %295 = vector.broadcast %294 : vector<12x1xi1> to vector<12x16xi1>
    %296 = vector.shape_cast %280 : vector<1x16xf32> to vector<1x16xf32>
    %297 = vector.broadcast %296 : vector<1x16xf32> to vector<12x16xf32>
    %298 = arith.select %295, %297, %293 : vector<12x16xi1>, vector<12x16xf32>
    %c0_104 = arith.constant 0 : index
    %c0_105 = arith.constant 0 : index
    %299 = vector.load %arg5[%c0_104, %c0_105] : memref<12x16xf32, #tpu.memory_space<vmem>>, vector<12x16xf32>
    tpu.vector_store %arg5[%c0_104, %c0_105], %298 {strides = array<i32>} : memref<12x16xf32, #tpu.memory_space<vmem>>, vector<12x16xf32>,
    %c8_i32 = arith.constant 8 : i32
    %300 = vector.broadcast %c8_i32 : i32 to vector<1x16xi32>
    %301 = arith.cmpi eq, %51, %300 : vector<1x16xi32>
    %c8_i32_106 = arith.constant 8 : i32
    %302 = vector.broadcast %c8_i32_106 : i32 to vector<12x1xi32>
    %303 = arith.cmpi eq, %36, %302 : vector<12x1xi32>
    %c8 = arith.constant 8 : index
    %c0_107 = arith.constant 0 : index
    %304 = vector.load %arg5[%c8, %c0_107] : memref<12x16xf32, #tpu.memory_space<vmem>>, vector<1x16xf32>
    %cst_108 = arith.constant 0.000000e+00 : f32
    %305 = vector.broadcast %cst_108 : f32 to vector<1x16xf32>
    %306 = arith.select %301, %304, %305 : vector<1x16xi1>, vector<1x16xf32>
    %cst_109 = arith.constant dense<0.000000e+00> : vector<1xf32>
    %307 = vector.multi_reduction <add>, %306, %cst_109 [1] : vector<1x16xf32> to vector<1xf32>
    %308 = vector.shape_cast %307 : vector<1xf32> to vector<1x1xf32>
    %309 = tpu.reciprocal %308 : vector<1x1xf32> -> vector<1x1xf32>
    %310 = vector.broadcast %309 : vector<1x1xf32> to vector<1x16xf32>
    %311 = arith.mulf %304, %310 : vector<1x16xf32>
    %c0_110 = arith.constant 0 : index
    %c0_111 = arith.constant 0 : index
    %312 = vector.load %arg5[%c0_110, %c0_111] : memref<12x16xf32, #tpu.memory_space<vmem>>, vector<12x16xf32>
    %cst_112 = arith.constant 0.000000e+00 : f32
    %313 = vector.shape_cast %301 : vector<1x16xi1> to vector<1x16xi1>
    %314 = vector.broadcast %313 : vector<1x16xi1> to vector<12x16xi1>
    %315 = vector.broadcast %cst_112 : f32 to vector<12x16xf32>
    %316 = arith.select %314, %312, %315 : vector<12x16xi1>, vector<12x16xf32>
    %cst_113 = arith.constant dense<0.000000e+00> : vector<12xf32>
    %317 = vector.multi_reduction <add>, %316, %cst_113 [1] : vector<12x16xf32> to vector<12xf32>
    %318 = vector.shape_cast %317 : vector<12xf32> to vector<12x1xf32>
    %cst_114 = arith.constant 0.000000e+00 : f32
    %319 = vector.broadcast %cst_114 : f32 to vector<12x1xf32>
    %320 = arith.select %303, %319, %318 : vector<12x1xi1>, vector<12x1xf32>
    %321 = vector.broadcast %320 : vector<12x1xf32> to vector<12x16xf32>
    %322 = vector.broadcast %311 : vector<1x16xf32> to vector<12x16xf32>
    %323 = arith.mulf %321, %322 : vector<12x16xf32>
    %324 = arith.subf %312, %323 : vector<12x16xf32>
    %325 = vector.shape_cast %303 : vector<12x1xi1> to vector<12x1xi1>
    %326 = vector.broadcast %325 : vector<12x1xi1> to vector<12x16xi1>
    %327 = vector.shape_cast %311 : vector<1x16xf32> to vector<1x16xf32>
    %328 = vector.broadcast %327 : vector<1x16xf32> to vector<12x16xf32>
    %329 = arith.select %326, %328, %324 : vector<12x16xi1>, vector<12x16xf32>
    %c0_115 = arith.constant 0 : index
    %c0_116 = arith.constant 0 : index
    %330 = vector.load %arg5[%c0_115, %c0_116] : memref<12x16xf32, #tpu.memory_space<vmem>>, vector<12x16xf32>
    tpu.vector_store %arg5[%c0_115, %c0_116], %329 {strides = array<i32>} : memref<12x16xf32, #tpu.memory_space<vmem>>, vector<12x16xf32>,
    %c9_i32 = arith.constant 9 : i32
    %331 = vector.broadcast %c9_i32 : i32 to vector<1x16xi32>
    %332 = arith.cmpi eq, %51, %331 : vector<1x16xi32>
    %c9_i32_117 = arith.constant 9 : i32
    %333 = vector.broadcast %c9_i32_117 : i32 to vector<12x1xi32>
    %334 = arith.cmpi eq, %36, %333 : vector<12x1xi32>
    %c9 = arith.constant 9 : index
    %c0_118 = arith.constant 0 : index
    %335 = vector.load %arg5[%c9, %c0_118] : memref<12x16xf32, #tpu.memory_space<vmem>>, vector<1x16xf32>
    %cst_119 = arith.constant 0.000000e+00 : f32
    %336 = vector.broadcast %cst_119 : f32 to vector<1x16xf32>
    %337 = arith.select %332, %335, %336 : vector<1x16xi1>, vector<1x16xf32>
    %cst_120 = arith.constant dense<0.000000e+00> : vector<1xf32>
    %338 = vector.multi_reduction <add>, %337, %cst_120 [1] : vector<1x16xf32> to vector<1xf32>
    %339 = vector.shape_cast %338 : vector<1xf32> to vector<1x1xf32>
    %340 = tpu.reciprocal %339 : vector<1x1xf32> -> vector<1x1xf32>
    %341 = vector.broadcast %340 : vector<1x1xf32> to vector<1x16xf32>
    %342 = arith.mulf %335, %341 : vector<1x16xf32>
    %c0_121 = arith.constant 0 : index
    %c0_122 = arith.constant 0 : index
    %343 = vector.load %arg5[%c0_121, %c0_122] : memref<12x16xf32, #tpu.memory_space<vmem>>, vector<12x16xf32>
    %cst_123 = arith.constant 0.000000e+00 : f32
    %344 = vector.shape_cast %332 : vector<1x16xi1> to vector<1x16xi1>
    %345 = vector.broadcast %344 : vector<1x16xi1> to vector<12x16xi1>
    %346 = vector.broadcast %cst_123 : f32 to vector<12x16xf32>
    %347 = arith.select %345, %343, %346 : vector<12x16xi1>, vector<12x16xf32>
    %cst_124 = arith.constant dense<0.000000e+00> : vector<12xf32>
    %348 = vector.multi_reduction <add>, %347, %cst_124 [1] : vector<12x16xf32> to vector<12xf32>
    %349 = vector.shape_cast %348 : vector<12xf32> to vector<12x1xf32>
    %cst_125 = arith.constant 0.000000e+00 : f32
    %350 = vector.broadcast %cst_125 : f32 to vector<12x1xf32>
    %351 = arith.select %334, %350, %349 : vector<12x1xi1>, vector<12x1xf32>
    %352 = vector.broadcast %351 : vector<12x1xf32> to vector<12x16xf32>
    %353 = vector.broadcast %342 : vector<1x16xf32> to vector<12x16xf32>
    %354 = arith.mulf %352, %353 : vector<12x16xf32>
    %355 = arith.subf %343, %354 : vector<12x16xf32>
    %356 = vector.shape_cast %334 : vector<12x1xi1> to vector<12x1xi1>
    %357 = vector.broadcast %356 : vector<12x1xi1> to vector<12x16xi1>
    %358 = vector.shape_cast %342 : vector<1x16xf32> to vector<1x16xf32>
    %359 = vector.broadcast %358 : vector<1x16xf32> to vector<12x16xf32>
    %360 = arith.select %357, %359, %355 : vector<12x16xi1>, vector<12x16xf32>
    %c0_126 = arith.constant 0 : index
    %c0_127 = arith.constant 0 : index
    %361 = vector.load %arg5[%c0_126, %c0_127] : memref<12x16xf32, #tpu.memory_space<vmem>>, vector<12x16xf32>
    tpu.vector_store %arg5[%c0_126, %c0_127], %360 {strides = array<i32>} : memref<12x16xf32, #tpu.memory_space<vmem>>, vector<12x16xf32>,
    %c10_i32 = arith.constant 10 : i32
    %362 = vector.broadcast %c10_i32 : i32 to vector<1x16xi32>
    %363 = arith.cmpi eq, %51, %362 : vector<1x16xi32>
    %c10_i32_128 = arith.constant 10 : i32
    %364 = vector.broadcast %c10_i32_128 : i32 to vector<12x1xi32>
    %365 = arith.cmpi eq, %36, %364 : vector<12x1xi32>
    %c10 = arith.constant 10 : index
    %c0_129 = arith.constant 0 : index
    %366 = vector.load %arg5[%c10, %c0_129] : memref<12x16xf32, #tpu.memory_space<vmem>>, vector<1x16xf32>
    %cst_130 = arith.constant 0.000000e+00 : f32
    %367 = vector.broadcast %cst_130 : f32 to vector<1x16xf32>
    %368 = arith.select %363, %366, %367 : vector<1x16xi1>, vector<1x16xf32>
    %cst_131 = arith.constant dense<0.000000e+00> : vector<1xf32>
    %369 = vector.multi_reduction <add>, %368, %cst_131 [1] : vector<1x16xf32> to vector<1xf32>
    %370 = vector.shape_cast %369 : vector<1xf32> to vector<1x1xf32>
    %371 = tpu.reciprocal %370 : vector<1x1xf32> -> vector<1x1xf32>
    %372 = vector.broadcast %371 : vector<1x1xf32> to vector<1x16xf32>
    %373 = arith.mulf %366, %372 : vector<1x16xf32>
    %c0_132 = arith.constant 0 : index
    %c0_133 = arith.constant 0 : index
    %374 = vector.load %arg5[%c0_132, %c0_133] : memref<12x16xf32, #tpu.memory_space<vmem>>, vector<12x16xf32>
    %cst_134 = arith.constant 0.000000e+00 : f32
    %375 = vector.shape_cast %363 : vector<1x16xi1> to vector<1x16xi1>
    %376 = vector.broadcast %375 : vector<1x16xi1> to vector<12x16xi1>
    %377 = vector.broadcast %cst_134 : f32 to vector<12x16xf32>
    %378 = arith.select %376, %374, %377 : vector<12x16xi1>, vector<12x16xf32>
    %cst_135 = arith.constant dense<0.000000e+00> : vector<12xf32>
    %379 = vector.multi_reduction <add>, %378, %cst_135 [1] : vector<12x16xf32> to vector<12xf32>
    %380 = vector.shape_cast %379 : vector<12xf32> to vector<12x1xf32>
    %cst_136 = arith.constant 0.000000e+00 : f32
    %381 = vector.broadcast %cst_136 : f32 to vector<12x1xf32>
    %382 = arith.select %365, %381, %380 : vector<12x1xi1>, vector<12x1xf32>
    %383 = vector.broadcast %382 : vector<12x1xf32> to vector<12x16xf32>
    %384 = vector.broadcast %373 : vector<1x16xf32> to vector<12x16xf32>
    %385 = arith.mulf %383, %384 : vector<12x16xf32>
    %386 = arith.subf %374, %385 : vector<12x16xf32>
    %387 = vector.shape_cast %365 : vector<12x1xi1> to vector<12x1xi1>
    %388 = vector.broadcast %387 : vector<12x1xi1> to vector<12x16xi1>
    %389 = vector.shape_cast %373 : vector<1x16xf32> to vector<1x16xf32>
    %390 = vector.broadcast %389 : vector<1x16xf32> to vector<12x16xf32>
    %391 = arith.select %388, %390, %386 : vector<12x16xi1>, vector<12x16xf32>
    %c0_137 = arith.constant 0 : index
    %c0_138 = arith.constant 0 : index
    %392 = vector.load %arg5[%c0_137, %c0_138] : memref<12x16xf32, #tpu.memory_space<vmem>>, vector<12x16xf32>
    tpu.vector_store %arg5[%c0_137, %c0_138], %391 {strides = array<i32>} : memref<12x16xf32, #tpu.memory_space<vmem>>, vector<12x16xf32>,
    %c11_i32 = arith.constant 11 : i32
    %393 = vector.broadcast %c11_i32 : i32 to vector<1x16xi32>
    %394 = arith.cmpi eq, %51, %393 : vector<1x16xi32>
    %c11_i32_139 = arith.constant 11 : i32
    %395 = vector.broadcast %c11_i32_139 : i32 to vector<12x1xi32>
    %396 = arith.cmpi eq, %36, %395 : vector<12x1xi32>
    %c11 = arith.constant 11 : index
    %c0_140 = arith.constant 0 : index
    %397 = vector.load %arg5[%c11, %c0_140] : memref<12x16xf32, #tpu.memory_space<vmem>>, vector<1x16xf32>
    %cst_141 = arith.constant 0.000000e+00 : f32
    %398 = vector.broadcast %cst_141 : f32 to vector<1x16xf32>
    %399 = arith.select %394, %397, %398 : vector<1x16xi1>, vector<1x16xf32>
    %cst_142 = arith.constant dense<0.000000e+00> : vector<1xf32>
    %400 = vector.multi_reduction <add>, %399, %cst_142 [1] : vector<1x16xf32> to vector<1xf32>
    %401 = vector.shape_cast %400 : vector<1xf32> to vector<1x1xf32>
    %402 = tpu.reciprocal %401 : vector<1x1xf32> -> vector<1x1xf32>
    %403 = vector.broadcast %402 : vector<1x1xf32> to vector<1x16xf32>
    %404 = arith.mulf %397, %403 : vector<1x16xf32>
    %c0_143 = arith.constant 0 : index
    %c0_144 = arith.constant 0 : index
    %405 = vector.load %arg5[%c0_143, %c0_144] : memref<12x16xf32, #tpu.memory_space<vmem>>, vector<12x16xf32>
    %cst_145 = arith.constant 0.000000e+00 : f32
    %406 = vector.shape_cast %394 : vector<1x16xi1> to vector<1x16xi1>
    %407 = vector.broadcast %406 : vector<1x16xi1> to vector<12x16xi1>
    %408 = vector.broadcast %cst_145 : f32 to vector<12x16xf32>
    %409 = arith.select %407, %405, %408 : vector<12x16xi1>, vector<12x16xf32>
    %cst_146 = arith.constant dense<0.000000e+00> : vector<12xf32>
    %410 = vector.multi_reduction <add>, %409, %cst_146 [1] : vector<12x16xf32> to vector<12xf32>
    %411 = vector.shape_cast %410 : vector<12xf32> to vector<12x1xf32>
    %cst_147 = arith.constant 0.000000e+00 : f32
    %412 = vector.broadcast %cst_147 : f32 to vector<12x1xf32>
    %413 = arith.select %396, %412, %411 : vector<12x1xi1>, vector<12x1xf32>
    %414 = vector.broadcast %413 : vector<12x1xf32> to vector<12x16xf32>
    %415 = vector.broadcast %404 : vector<1x16xf32> to vector<12x16xf32>
    %416 = arith.mulf %414, %415 : vector<12x16xf32>
    %417 = arith.subf %405, %416 : vector<12x16xf32>
    %418 = vector.shape_cast %396 : vector<12x1xi1> to vector<12x1xi1>
    %419 = vector.broadcast %418 : vector<12x1xi1> to vector<12x16xi1>
    %420 = vector.shape_cast %404 : vector<1x16xf32> to vector<1x16xf32>
    %421 = vector.broadcast %420 : vector<1x16xf32> to vector<12x16xf32>
    %422 = arith.select %419, %421, %417 : vector<12x16xi1>, vector<12x16xf32>
    %c0_148 = arith.constant 0 : index
    %c0_149 = arith.constant 0 : index
    %423 = vector.load %arg5[%c0_148, %c0_149] : memref<12x16xf32, #tpu.memory_space<vmem>>, vector<12x16xf32>
    tpu.vector_store %arg5[%c0_148, %c0_149], %422 {strides = array<i32>} : memref<12x16xf32, #tpu.memory_space<vmem>>, vector<12x16xf32>,
    %c0_150 = arith.constant 0 : index
    %c0_151 = arith.constant 0 : index
    %424 = vector.load %arg5[%c0_150, %c0_151] : memref<12x16xf32, #tpu.memory_space<vmem>>, vector<12x16xf32>
    %425 = vector.extract_strided_slice %424 {offsets = [0, 12], sizes = [12, 4], strides = [1, 1]} : vector<12x16xf32> to vector<12x4xf32>
    %cst_152 = arith.constant dense<0.000000e+00> : vector<8x12xf32>
    %426 = tpu.matmul %28, %15, %cst_152 {dimension_numbers = #tpu.dot_dimension_numbers<[1], [1], [0], [0], [0, 0, 1, 0], [], []>} : vector<8x32xf32>, vector<12x32xf32>, vector<8x12xf32> -> vector<8x12xf32>
    %cst_153 = arith.constant 2.30258512 : f32
    %427 = arith.mulf %1, %cst_153 : f32
    %428 = math.exp %427 : f32
    %cst_154 = arith.constant dense<0.000000e+00> : vector<8x4xf32>
    %429 = tpu.matmul %426, %425, %cst_154 {dimension_numbers = #tpu.dot_dimension_numbers<[1], [0], [0], [1], [0, 0, 1, 1], [], []>} : vector<8x12xf32>, vector<12x4xf32>, vector<8x4xf32> -> vector<8x4xf32>
    %430 = vector.broadcast %428 : f32 to vector<8x4xf32>
    %431 = arith.mulf %430, %429 : vector<8x4xf32>
    %432 = vector.broadcast %2 : f32 to vector<8x4xf32>
    %433 = arith.addf %431, %432 : vector<8x4xf32>
    %c0_155 = arith.constant 0 : index
    %c0_156 = arith.constant 0 : index
    %434 = vector.load %arg4[%c0_155, %c0_156] : memref<8x4xf32, #tpu.memory_space<vmem>>, vector<8x4xf32>
    tpu.vector_store %arg4[%c0_155, %c0_156], %433 {strides = array<i32>} : memref<8x4xf32, #tpu.memory_space<vmem>>, vector<8x4xf32>,
    return
  }
}

</mosaic_0001>

<llo_original>
// kernel: tpu_custom_call.1
$region0: #{tpu_custom_call.1}
  #allocation0 [shape = 'u32[]', space=smem, size = 0x4, offset = 0x4, fixed_abs, tag = 'smem constant byte address 0x4 - core index']
  #allocation1 [shape = 'u32[144,128]{1,0:T(1,128)}', space=vmem, size = 0x12000, scoped, tag = 'internal scratch']
  #allocation2 [shape = 'f32[12,16]{1,0:T(8,128)}', space=vmem, size = 0x2000, scoped, tag = 'scratch operand']
  %s0 = inlined_call_operand.vmem [shape: f32[3], index: 0, kind: input, shape index: {}]
  %s1 = inlined_call_operand.vmem [shape: f32[12,32], index: 1, kind: input, shape index: {}]
  %s2 = inlined_call_operand.vmem [shape: s32[12,1], index: 2, kind: input, shape index: {}]
  %s3 = inlined_call_operand.hbm [shape: f32[8,32], index: 3, kind: input, shape index: {}]
  %s4 = inlined_call_operand.vmem [shape: f32[8,4], index: 4, kind: output, shape index: {}]
  %s5 = sld [smem:[#allocation0]]
  $region34: #{tpu_custom_call.1} parent=0
    _
  %s7 = ssub.s32 1, %s5
  %s8 = scalar_select 0, %s7, %s5
  $region1: #{tpu_custom_call.1} parent=0
    #allocation3 [shape = 'u8[512]{0}', space=smem, size = 0x200, scoped, tag = 'input window, operand 0, single buffered']
    #allocation4 [shape = 's32[1]{0}', space=sflag, size = 0x4, scoped, tag = 'scoped memory for tpu_custom_call.1']
    #allocation5 [shape = 's32[1]{0}', space=sflag, size = 0x4, scoped, tag = 'scoped memory for tpu_custom_call.1']
    #allocation6 [shape = 'u8[4096]{0}', space=vmem, size = 0x1000, scoped, tag = 'input window, operand 3, single buffered']
    %9 = vsyncpa [#allocation5], 0
    %10 = vsyncpa [#allocation4], 0
    // Predicated region
    $region2: #{tpu_custom_call.1} parent=1 // pred_check
      _
    $region3: #{tpu_custom_call.1} parent=1 // pred_check_branch
      %12 = sbr.rel (0) target = $region5
    $region4: #{tpu_custom_call.1} parent=1 // pred_region
      %s14 = ssub.s32 16, 16
      %15 = vsyncadd [#allocation5], %s14
      %s17 = sshll.u32 %s0, 4
      %s18 = int_to_ptr.vmem [resolvable:$true] %s17
      %20 = dma.vmem_to_smem %s18, 16, [#allocation3], [#allocation5]
    $region5: #{tpu_custom_call.1} parent=1 // pred_fallthru
      _
    // Predicated region
    $region6: #{tpu_custom_call.1} parent=1 // pred_check
      _
    $region7: #{tpu_custom_call.1} parent=1 // pred_check_branch
      %22 = sbr.rel (0) target = $region9
    $region8: #{tpu_custom_call.1} parent=1 // pred_region
      _
    $region9: #{tpu_custom_call.1} parent=1 // pred_fallthru
      _
    // Predicated region
    $region10: #{tpu_custom_call.1} parent=1 // pred_check
      _
    $region11: #{tpu_custom_call.1} parent=1 // pred_check_branch
      %24 = sbr.rel (0) target = $region13
    $region12: #{tpu_custom_call.1} parent=1 // pred_region
      _
    $region13: #{tpu_custom_call.1} parent=1 // pred_fallthru
      _
    // Predicated region
    $region14: #{tpu_custom_call.1} parent=1 // pred_check
      _
    $region15: #{tpu_custom_call.1} parent=1 // pred_check_branch
      %26 = sbr.rel (0) target = $region17
    $region16: #{tpu_custom_call.1} parent=1 // pred_region
      %s28 = ssub.s32 128, 128
      %29 = vsyncadd [#allocation4], %s28
      %s31 = sshll.u32 [#allocation6], 4
      %s32 = int_to_ptr.vmem [resolvable:$true] %s31
      %34 = dma.hbm_to_vmem [thread:$0]  %s3, 128, %s32, [#allocation4]
    $region17: #{tpu_custom_call.1} parent=1 // pred_fallthru
      _
    // Predicated region
    $region18: #{tpu_custom_call.1} parent=1 // pred_check
      _
    $region19: #{tpu_custom_call.1} parent=1 // pred_check_branch
      %36 = sbr.rel (0) target = $region21
    $region20: #{tpu_custom_call.1} parent=1 // pred_region
      %37 = dma.done [#allocation5], 16
    $region21: #{tpu_custom_call.1} parent=1 // pred_fallthru
      _
    // Predicated region
    $region22: #{tpu_custom_call.1} parent=1 // pred_check
      _
    $region23: #{tpu_custom_call.1} parent=1 // pred_check_branch
      %39 = sbr.rel (0) target = $region25
    $region24: #{tpu_custom_call.1} parent=1 // pred_region
      %40 = dma.done [#allocation4], 128
    $region25: #{tpu_custom_call.1} parent=1 // pred_fallthru
      _
    %41 = sfence
    %s42 = sld [smem:[#allocation3]]
    %s43 = sld [smem:[#allocation3 + $0x1]]
    %s44 = sld [smem:[#allocation3 + $0x2]]
    %v45 = vld [vmem:[%s1] sm:$0xff]
    %v46 = vld [vmem:[%s1 + $0x8] sm:$0xf]
    %vm47 = vcmask 261120
    %v48 = vsel %vm47, %v45, 0.0
    %vm49 = vcmask 257024
    %v50 = vsel %vm49, %v46, 0.0
    %v51 = vadd.f32 %v48, %v50
    %v52 = vrot.slane %v51, 4
    %v53 = vadd.f32 %v51, %v52
    %v54 = vrot.slane %v53, 2
    %v55 = vadd.f32 %v53, %v54
    %v56 = vrot.slane %v55, 1
    %v57 = vadd.f32 %v55, %v56
    %v58 = vrcp.pop 12.0
    %v59 = vmul.f32 %v57, %v58
    %v60 = vsub.f32 %v45, %v59
    %v61 = vsub.f32 %v46, %v59
    %v62 = vmul.f32 %v60, %v60
    %v63 = vmul.f32 %v61, %v61
    %v64 = vsel %vm47, %v62, 0.0
    %65 = vadd.xlane.f32.xlu0 %v64
    %v66 = vpop.xlane.xlu0 %65
    %v67 = vsel %vm49, %v63, 0.0
    %68 = vadd.xlane.f32.xlu0 %v67
    %v69 = vpop.xlane.xlu0 %68
    %v70 = vrsqrt.pop %v66
    %v71 = vrsqrt.pop %v69
    %v72 = vmul.f32 %v60, %v70
    %v73 = vmul.f32 %v61, %v71
    %v74 = vld [vmem:[#allocation6] sm:$0xff]
    %v75 = vsel %vm47, %v74, 0.0
    %v76 = vrot.slane %v75, 4
    %v77 = vadd.f32 %v75, %v76
    %v78 = vrot.slane %v77, 2
    %v79 = vadd.f32 %v77, %v78
    %v80 = vrot.slane %v79, 1
    %v81 = vadd.f32 %v79, %v80
    %v82 = vrcp.pop 8.0
    %v83 = vmul.f32 %v81, %v82
    %v84 = vsub.f32 %v74, %v83
    %v85 = vmul.f32 %v84, %v84
    %v86 = vsel %vm47, %v85, 0.0
    %87 = vadd.xlane.f32.xlu0 %v86
    %v88 = vpop.xlane.xlu0 %87
    %v89 = vrsqrt.pop %v88
    %v90 = vmul.f32 %v84, %v89
    %v91 = vld [vmem:[%s2] sm:$0xff]
    %v92 = vld [vmem:[%s2 + $0x8] sm:$0xf]
    %v93 = vlaneseq
    %v94 = vand.u32 %v93, 127
    %95 = vset.pattern.permute.xlu0 0
    %96 = vperm.xlu0 %95, %v91
    %v97 = vpop.permute.xlu0 %96
    %98 = vset.pattern.permute.xlu0 0
    %99 = vperm.xlu0 %98, %v92
    %v100 = vpop.permute.xlu0 %99
    %vm101 = vcmp.eq.s32.totalorder %v97, %v94
    %vm102 = vcmp.eq.s32.totalorder %v100, %v94
    %v103 = vsel %vm101, 1, 0
    %v104 = vsel %vm102, 1, 0
    %v105 = vcvt.s32.f32 %v103
    %v106 = vcvt.s32.f32 %v104
    %v107 = vlaneseq
    %v108 = vshrl.u32 %v107, 7
    %v109 = vadd.s32 %v108, 8
    %vm110 = vcmp.eq.s32.totalorder %v108, %v94
    %vm111 = vcmp.eq.s32.totalorder %v109, %v94
    %v112 = vsel %vm110, 1, 0
    %v113 = vsel %vm111, 1, 0
    %v114 = vcvt.s32.f32 %v112
    %v115 = vcvt.s32.f32 %v113
    %s116 = smul.f32 %s42, 2.3025851
    %v117 = vstv %s116
    %v118 = vmul.f32 %v117, 1.442695
    %v119 = vpow.pop %v118
    %s120 = vtos %v119
    %v121 = vstv %s120
    %v122 = vmul.f32 %v121, %v114
    %v123 = vmul.f32 %v121, %v115
    %v125 = vsel %vm47, %v72, 0
    %v128 = vsel %vm47, %v73, 0
    %130 = vmatprep.subr.mxu0 0.0
    %131 = vmatpush1.xpose.msra.mxu0 0.0
    %132 = vmatprep.subr.mxu0 0.0
    %133 = vmatpush1.xpose.msra.mxu0 0.0
    %134 = vmatprep.subr.mxu0 0.0
    %135 = vmatpush1.xpose.msra.mxu0 0.0
    %136 = vmatprep.subr.mxu0 0.0
    %137 = vmatpush1.xpose.msra.mxu0 0.0
    %138 = vmatprep.subr.mxu0 0.0
    %139 = vmatpush1.xpose.msra.mxu0 0.0
    %140 = vmatprep.subr.mxu0 0.0
    %141 = vmatpush1.xpose.msra.mxu0 0.0
    %142 = vmatprep.subr.mxu0 0.0
    %143 = vmatpush1.xpose.msra.mxu0 0.0
    %144 = vmatprep.subr.mxu0 0.0
    %145 = vmatpush1.xpose.msra.mxu0 0.0
    %146 = vmatprep.subr.mxu0 0.0
    %147 = vmatpush1.xpose.msra.mxu0 0.0
    %148 = vmatprep.subr.mxu0 0.0
    %149 = vmatpush1.xpose.msra.mxu0 0.0
    %150 = vmatprep.subr.mxu0 0.0
    %151 = vmatpush1.xpose.msra.mxu0 0.0
    %152 = vmatprep.subr.mxu0 0.0
    %153 = vmatpush1.xpose.msra.mxu0 0.0
    %154 = vmatprep.subr.mxu0 0.0
    %155 = vmatpush1.xpose.msra.mxu0 0.0
    %156 = vmatprep.subr.mxu0 0.0
    %157 = vmatpush1.xpose.msra.mxu0 0.0
    %158 = vmatprep.subr.mxu0 0.0
    %159 = vmatpush1.xpose.msra.mxu0 %v128
    %160 = vmatprep.subr.mxu0 0.0
    %161 = vmatpush1.xpose.msra.mxu0 %v125
    %162 = vmatprep.subr.mxu0 0.0
    %163 = vmatpush2.xpose.msra.mxu0 0.0
    %164 = vmatprep.subr.mxu0 0.0
    %165 = vmatpush2.xpose.msra.mxu0 0.0
    %166 = vmatprep.subr.mxu0 0.0
    %167 = vmatpush2.xpose.msra.mxu0 0.0
    %168 = vmatprep.subr.mxu0 0.0
    %169 = vmatpush2.xpose.msra.mxu0 0.0
    %170 = vmatprep.subr.mxu0 0.0
    %171 = vmatpush2.xpose.msra.mxu0 0.0
    %172 = vmatprep.subr.mxu0 0.0
    %173 = vmatpush2.xpose.msra.mxu0 0.0
    %174 = vmatprep.subr.mxu0 0.0
    %175 = vmatpush2.xpose.msra.mxu0 0.0
    %176 = vmatprep.subr.mxu0 0.0
    %177 = vmatpush2.xpose.msra.mxu0 0.0
    %178 = vmatprep.subr.mxu0 0.0
    %179 = vmatpush2.xpose.msra.mxu0 0.0
    %180 = vmatprep.subr.mxu0 0.0
    %181 = vmatpush2.xpose.msra.mxu0 0.0
    %182 = vmatprep.subr.mxu0 0.0
    %183 = vmatpush2.xpose.msra.mxu0 0.0
    %184 = vmatprep.subr.mxu0 0.0
    %185 = vmatpush2.xpose.msra.mxu0 0.0
    %186 = vmatprep.subr.mxu0 0.0
    %187 = vmatpush2.xpose.msra.mxu0 0.0
    %188 = vmatprep.subr.mxu0 0.0
    %189 = vmatpush2.xpose.msra.mxu0 0.0
    %190 = vmatprep.subr.mxu0 0.0
    %191 = vmatpush2.xpose.msra.mxu0 0.0
    %192 = vmatprep.subr.mxu0 0.0
    %193 = vmatpush2.xpose.msra.mxu0 0.0
    %194 = vmatprep.mubr.f32.mxu0 0.0
    %195 = vmatmul.mubr.f32.gmra.mxu0 %v125
    %v196 = vpop.f32.mrf.mxu0
    %v197 = vadd.f32 %v122, %v196
    %v198 = vpop.f32.mrf.mxu0
    %199 = vmatprep.mubr.f32.mxu0 0.0
    %200 = vmatmul.mubr.f32.gmra.mxu0 %v128
    %v201 = vpop.f32.mrf.mxu0
    %v202 = vadd.f32 %v123, %v201
    %v203 = vpop.f32.mrf.mxu0
    %204 = vdwg.mxu0
    %207 = vrot.lane.b32.xlu0 %v105, 12
    %v208 = vpop.permute.xlu0 %207
    %209 = vrot.lane.b32.xlu0 %v106, 12
    %v210 = vpop.permute.xlu0 %209
    %vm213 = vcmask 97280
    %v214 = vsel %vm213, %v197, %v208
    %v215 = vsel %vm213, %v202, %v210
    %vm216 = vcmask 130048
    %217 = vst.msk [vmem:[#allocation2] sm:$0xff] %vm216, %v214
    %vm218 = vcmask 125952
    %219 = vst.msk [vmem:[#allocation2 + $0x8] sm:$0xf] %vm218, %v215
    %vm220 = vcmp.eq.s32.totalorder %v94, 0
    %vm221 = vcmp.eq.s32.totalorder %v108, 0
    %vm222 = vcmp.eq.s32.totalorder %v109, 0
    %v223 = vld [vmem:[#allocation2] sm:$0x1]
    %v224 = vsel %vm220, %v223, 0.0
    %vm225 = vcmask 122880
    %v226 = vsel %vm225, %v224, 0.0
    %227 = vadd.xlane.f32.xlu0 %v226
    %v228 = vpop.xlane.xlu0 %227
    %v229 = vrcp.pop %v228
    %v230 = vmul.f32 %v223, %v229
    %v231 = vld [vmem:[#allocation2] sm:$0xff]
    %v232 = vld [vmem:[#allocation2 + $0x8] sm:$0xf]
    %v233 = vsel %vm220, 1, 0
    %vm234 = vcmp.eq.s32.totalorder %v233, 1
    %v235 = vsel %vm234, %v231, 0.0
    %v236 = vsel %vm234, %v232, 0.0
    %v237 = vsel %vm216, %v235, 0.0
    %238 = vadd.xlane.f32.xlu0 %v237
    %v239 = vpop.xlane.xlu0 %238
    %v240 = vsel %vm218, %v236, 0.0
    %241 = vadd.xlane.f32.xlu0 %v240
    %v242 = vpop.xlane.xlu0 %241
    %v243 = vsel %vm221, 0.0, %v239
    %v244 = vsel %vm222, 0.0, %v242
    %v245 = vlaneseq
    %v246 = vshrl.u32 %v245, 7
    %v247 = vsub.s32 0, %v246
    %v248 = vrot.slane %v230, %v247
    %v249 = vmul.f32 %v243, %v248
    %v250 = vmul.f32 %v244, %v248
    %v251 = vsub.f32 %v231, %v249
    %v252 = vsub.f32 %v232, %v250
    %v253 = vsel %vm221, 1, 0
    %v254 = vsel %vm222, 1, 0
    %vm255 = vcmp.eq.s32.totalorder %v253, 1
    %vm256 = vcmp.eq.s32.totalorder %v254, 1
    %v257 = vsel %vm255, %v248, %v251
    %v258 = vsel %vm256, %v248, %v252
    %259 = vst.msk [vmem:[#allocation2] sm:$0xff] %vm216, %v257
    %260 = vst.msk [vmem:[#allocation2 + $0x8] sm:$0xf] %vm218, %v258
    %vm261 = vcmp.eq.s32.totalorder %v94, 1
    %vm262 = vcmp.eq.s32.totalorder %v108, 1
    %vm263 = vcmp.eq.s32.totalorder %v109, 1
    %v264 = vld [vmem:[#allocation2 + $0x1] sm:$0x1]
    %v265 = vsel %vm261, %v264, 0.0
    %v266 = vsel %vm225, %v265, 0.0
    %267 = vadd.xlane.f32.xlu0 %v266
    %v268 = vpop.xlane.xlu0 %267
    %v269 = vrcp.pop %v268
    %v270 = vmul.f32 %v264, %v269
    %v271 = vld [vmem:[#allocation2] sm:$0xff]
    %v272 = vld [vmem:[#allocation2 + $0x8] sm:$0xf]
    %v273 = vsel %vm261, 1, 0
    %vm274 = vcmp.eq.s32.totalorder %v273, 1
    %v275 = vsel %vm274, %v271, 0.0
    %v276 = vsel %vm274, %v272, 0.0
    %v277 = vsel %vm216, %v275, 0.0
    %278 = vadd.xlane.f32.xlu0 %v277
    %v279 = vpop.xlane.xlu0 %278
    %v280 = vsel %vm218, %v276, 0.0
    %281 = vadd.xlane.f32.xlu0 %v280
    %v282 = vpop.xlane.xlu0 %281
    %v283 = vsel %vm262, 0.0, %v279
    %v284 = vsel %vm263, 0.0, %v282
    %v285 = vlaneseq
    %v286 = vshrl.u32 %v285, 7
    %v287 = vsub.s32 0, %v286
    %v288 = vrot.slane %v270, %v287
    %v289 = vmul.f32 %v283, %v288
    %v290 = vmul.f32 %v284, %v288
    %v291 = vsub.f32 %v271, %v289
    %v292 = vsub.f32 %v272, %v290
    %v293 = vsel %vm262, 1, 0
    %v294 = vsel %vm263, 1, 0
    %vm295 = vcmp.eq.s32.totalorder %v293, 1
    %vm296 = vcmp.eq.s32.totalorder %v294, 1
    %v297 = vsel %vm295, %v288, %v291
    %v298 = vsel %vm296, %v288, %v292
    %299 = vst.msk [vmem:[#allocation2] sm:$0xff] %vm216, %v297
    %300 = vst.msk [vmem:[#allocation2 + $0x8] sm:$0xf] %vm218, %v298
    %vm301 = vcmp.eq.s32.totalorder %v94, 2
    %vm302 = vcmp.eq.s32.totalorder %v108, 2
    %vm303 = vcmp.eq.s32.totalorder %v109, 2
    %v304 = vld [vmem:[#allocation2 + $0x2] sm:$0x1]
    %v305 = vsel %vm301, %v304, 0.0
    %v306 = vsel %vm225, %v305, 0.0
    %307 = vadd.xlane.f32.xlu0 %v306
    %v308 = vpop.xlane.xlu0 %307
    %v309 = vrcp.pop %v308
    %v310 = vmul.f32 %v304, %v309
    %v311 = vld [vmem:[#allocation2] sm:$0xff]
    %v312 = vld [vmem:[#allocation2 + $0x8] sm:$0xf]
    %v313 = vsel %vm301, 1, 0
    %vm314 = vcmp.eq.s32.totalorder %v313, 1
    %v315 = vsel %vm314, %v311, 0.0
    %v316 = vsel %vm314, %v312, 0.0
    %v317 = vsel %vm216, %v315, 0.0
    %318 = vadd.xlane.f32.xlu0 %v317
    %v319 = vpop.xlane.xlu0 %318
    %v320 = vsel %vm218, %v316, 0.0
    %321 = vadd.xlane.f32.xlu0 %v320
    %v322 = vpop.xlane.xlu0 %321
    %v323 = vsel %vm302, 0.0, %v319
    %v324 = vsel %vm303, 0.0, %v322
    %v325 = vlaneseq
    %v326 = vshrl.u32 %v325, 7
    %v327 = vsub.s32 0, %v326
    %v328 = vrot.slane %v310, %v327
    %v329 = vmul.f32 %v323, %v328
    %v330 = vmul.f32 %v324, %v328
    %v331 = vsub.f32 %v311, %v329
    %v332 = vsub.f32 %v312, %v330
    %v333 = vsel %vm302, 1, 0
    %v334 = vsel %vm303, 1, 0
    %vm335 = vcmp.eq.s32.totalorder %v333, 1
    %vm336 = vcmp.eq.s32.totalorder %v334, 1
    %v337 = vsel %vm335, %v328, %v331
    %v338 = vsel %vm336, %v328, %v332
    %339 = vst.msk [vmem:[#allocation2] sm:$0xff] %vm216, %v337
    %340 = vst.msk [vmem:[#allocation2 + $0x8] sm:$0xf] %vm218, %v338
    %vm341 = vcmp.eq.s32.totalorder %v94, 3
    %vm342 = vcmp.eq.s32.totalorder %v108, 3
    %vm343 = vcmp.eq.s32.totalorder %v109, 3
    %v344 = vld [vmem:[#allocation2 + $0x3] sm:$0x1]
    %v345 = vsel %vm341, %v344, 0.0
    %v346 = vsel %vm225, %v345, 0.0
    %347 = vadd.xlane.f32.xlu0 %v346
    %v348 = vpop.xlane.xlu0 %347
    %v349 = vrcp.pop %v348
    %v350 = vmul.f32 %v344, %v349
    %v351 = vld [vmem:[#allocation2] sm:$0xff]
    %v352 = vld [vmem:[#allocation2 + $0x8] sm:$0xf]
    %v353 = vsel %vm341, 1, 0
    %vm354 = vcmp.eq.s32.totalorder %v353, 1
    %v355 = vsel %vm354, %v351, 0.0
    %v356 = vsel %vm354, %v352, 0.0
    %v357 = vsel %vm216, %v355, 0.0
    %358 = vadd.xlane.f32.xlu0 %v357
    %v359 = vpop.xlane.xlu0 %358
    %v360 = vsel %vm218, %v356, 0.0
    %361 = vadd.xlane.f32.xlu0 %v360
    %v362 = vpop.xlane.xlu0 %361
    %v363 = vsel %vm342, 0.0, %v359
    %v364 = vsel %vm343, 0.0, %v362
    %v365 = vlaneseq
    %v366 = vshrl.u32 %v365, 7
    %v367 = vsub.s32 0, %v366
    %v368 = vrot.slane %v350, %v367
    %v369 = vmul.f32 %v363, %v368
    %v370 = vmul.f32 %v364, %v368
    %v371 = vsub.f32 %v351, %v369
    %v372 = vsub.f32 %v352, %v370
    %v373 = vsel %vm342, 1, 0
    %v374 = vsel %vm343, 1, 0
    %vm375 = vcmp.eq.s32.totalorder %v373, 1
    %vm376 = vcmp.eq.s32.totalorder %v374, 1
    %v377 = vsel %vm375, %v368, %v371
    %v378 = vsel %vm376, %v368, %v372
    %379 = vst.msk [vmem:[#allocation2] sm:$0xff] %vm216, %v377
    %380 = vst.msk [vmem:[#allocation2 + $0x8] sm:$0xf] %vm218, %v378
    %vm381 = vcmp.eq.s32.totalorder %v94, 4
    %vm382 = vcmp.eq.s32.totalorder %v108, 4
    %vm383 = vcmp.eq.s32.totalorder %v109, 4
    %v384 = vld [vmem:[#allocation2 + $0x4] sm:$0x1]
    %v385 = vsel %vm381, %v384, 0.0
    %v386 = vsel %vm225, %v385, 0.0
    %387 = vadd.xlane.f32.xlu0 %v386
    %v388 = vpop.xlane.xlu0 %387
    %v389 = vrcp.pop %v388
    %v390 = vmul.f32 %v384, %v389
    %v391 = vld [vmem:[#allocation2] sm:$0xff]
    %v392 = vld [vmem:[#allocation2 + $0x8] sm:$0xf]
    %v393 = vsel %vm381, 1, 0
    %vm394 = vcmp.eq.s32.totalorder %v393, 1
    %v395 = vsel %vm394, %v391, 0.0
    %v396 = vsel %vm394, %v392, 0.0
    %v397 = vsel %vm216, %v395, 0.0
    %398 = vadd.xlane.f32.xlu0 %v397
    %v399 = vpop.xlane.xlu0 %398
    %v400 = vsel %vm218, %v396, 0.0
    %401 = vadd.xlane.f32.xlu0 %v400
    %v402 = vpop.xlane.xlu0 %401
    %v403 = vsel %vm382, 0.0, %v399
    %v404 = vsel %vm383, 0.0, %v402
    %v405 = vlaneseq
    %v406 = vshrl.u32 %v405, 7
    %v407 = vsub.s32 0, %v406
    %v408 = vrot.slane %v390, %v407
    %v409 = vmul.f32 %v403, %v408
    %v410 = vmul.f32 %v404, %v408
    %v411 = vsub.f32 %v391, %v409
    %v412 = vsub.f32 %v392, %v410
    %v413 = vsel %vm382, 1, 0
    %v414 = vsel %vm383, 1, 0
    %vm415 = vcmp.eq.s32.totalorder %v413, 1
    %vm416 = vcmp.eq.s32.totalorder %v414, 1
    %v417 = vsel %vm415, %v408, %v411
    %v418 = vsel %vm416, %v408, %v412
    %419 = vst.msk [vmem:[#allocation2] sm:$0xff] %vm216, %v417
    %420 = vst.msk [vmem:[#allocation2 + $0x8] sm:$0xf] %vm218, %v418
    %vm421 = vcmp.eq.s32.totalorder %v94, 5
    %vm422 = vcmp.eq.s32.totalorder %v108, 5
    %vm423 = vcmp.eq.s32.totalorder %v109, 5
    %v424 = vld [vmem:[#allocation2 + $0x5] sm:$0x1]
    %v425 = vsel %vm421, %v424, 0.0
    %v426 = vsel %vm225, %v425, 0.0
    %427 = vadd.xlane.f32.xlu0 %v426
    %v428 = vpop.xlane.xlu0 %427
    %v429 = vrcp.pop %v428
    %v430 = vmul.f32 %v424, %v429
    %v431 = vld [vmem:[#allocation2] sm:$0xff]
    %v432 = vld [vmem:[#allocation2 + $0x8] sm:$0xf]
    %v433 = vsel %vm421, 1, 0
    %vm434 = vcmp.eq.s32.totalorder %v433, 1
    %v435 = vsel %vm434, %v431, 0.0
    %v436 = vsel %vm434, %v432, 0.0
    %v437 = vsel %vm216, %v435, 0.0
    %438 = vadd.xlane.f32.xlu0 %v437
    %v439 = vpop.xlane.xlu0 %438
    %v440 = vsel %vm218, %v436, 0.0
    %441 = vadd.xlane.f32.xlu0 %v440
    %v442 = vpop.xlane.xlu0 %441
    %v443 = vsel %vm422, 0.0, %v439
    %v444 = vsel %vm423, 0.0, %v442
    %v445 = vlaneseq
    %v446 = vshrl.u32 %v445, 7
    %v447 = vsub.s32 0, %v446
    %v448 = vrot.slane %v430, %v447
    %v449 = vmul.f32 %v443, %v448
    %v450 = vmul.f32 %v444, %v448
    %v451 = vsub.f32 %v431, %v449
    %v452 = vsub.f32 %v432, %v450
    %v453 = vsel %vm422, 1, 0
    %v454 = vsel %vm423, 1, 0
    %vm455 = vcmp.eq.s32.totalorder %v453, 1
    %vm456 = vcmp.eq.s32.totalorder %v454, 1
    %v457 = vsel %vm455, %v448, %v451
    %v458 = vsel %vm456, %v448, %v452
    %459 = vst.msk [vmem:[#allocation2] sm:$0xff] %vm216, %v457
    %460 = vst.msk [vmem:[#allocation2 + $0x8] sm:$0xf] %vm218, %v458
    %vm461 = vcmp.eq.s32.totalorder %v94, 6
    %vm462 = vcmp.eq.s32.totalorder %v108, 6
    %vm463 = vcmp.eq.s32.totalorder %v109, 6
    %v464 = vld [vmem:[#allocation2 + $0x6] sm:$0x1]
    %v465 = vsel %vm461, %v464, 0.0
    %v466 = vsel %vm225, %v465, 0.0
    %467 = vadd.xlane.f32.xlu0 %v466
    %v468 = vpop.xlane.xlu0 %467
    %v469 = vrcp.pop %v468
    %v470 = vmul.f32 %v464, %v469
    %v471 = vld [vmem:[#allocation2] sm:$0xff]
    %v472 = vld [vmem:[#allocation2 + $0x8] sm:$0xf]
    %v473 = vsel %vm461, 1, 0
    %vm474 = vcmp.eq.s32.totalorder %v473, 1
    %v475 = vsel %vm474, %v471, 0.0
    %v476 = vsel %vm474, %v472, 0.0
    %v477 = vsel %vm216, %v475, 0.0
    %478 = vadd.xlane.f32.xlu0 %v477
    %v479 = vpop.xlane.xlu0 %478
    %v480 = vsel %vm218, %v476, 0.0
    %481 = vadd.xlane.f32.xlu0 %v480
    %v482 = vpop.xlane.xlu0 %481
    %v483 = vsel %vm462, 0.0, %v479
    %v484 = vsel %vm463, 0.0, %v482
    %v485 = vlaneseq
    %v486 = vshrl.u32 %v485, 7
    %v487 = vsub.s32 0, %v486
    %v488 = vrot.slane %v470, %v487
    %v489 = vmul.f32 %v483, %v488
    %v490 = vmul.f32 %v484, %v488
    %v491 = vsub.f32 %v471, %v489
    %v492 = vsub.f32 %v472, %v490
    %v493 = vsel %vm462, 1, 0
    %v494 = vsel %vm463, 1, 0
    %vm495 = vcmp.eq.s32.totalorder %v493, 1
    %vm496 = vcmp.eq.s32.totalorder %v494, 1
    %v497 = vsel %vm495, %v488, %v491
    %v498 = vsel %vm496, %v488, %v492
    %499 = vst.msk [vmem:[#allocation2] sm:$0xff] %vm216, %v497
    %500 = vst.msk [vmem:[#allocation2 + $0x8] sm:$0xf] %vm218, %v498
    %vm501 = vcmp.eq.s32.totalorder %v94, 7
    %vm502 = vcmp.eq.s32.totalorder %v108, 7
    %vm503 = vcmp.eq.s32.totalorder %v109, 7
    %v504 = vld [vmem:[#allocation2 + $0x7] sm:$0x1]
    %v505 = vsel %vm501, %v504, 0.0
    %v506 = vsel %vm225, %v505, 0.0
    %507 = vadd.xlane.f32.xlu0 %v506
    %v508 = vpop.xlane.xlu0 %507
    %v509 = vrcp.pop %v508
    %v510 = vmul.f32 %v504, %v509
    %v511 = vld [vmem:[#allocation2] sm:$0xff]
    %v512 = vld [vmem:[#allocation2 + $0x8] sm:$0xf]
    %v513 = vsel %vm501, 1, 0
    %vm514 = vcmp.eq.s32.totalorder %v513, 1
    %v515 = vsel %vm514, %v511, 0.0
    %v516 = vsel %vm514, %v512, 0.0
    %v517 = vsel %vm216, %v515, 0.0
    %518 = vadd.xlane.f32.xlu0 %v517
    %v519 = vpop.xlane.xlu0 %518
    %v520 = vsel %vm218, %v516, 0.0
    %521 = vadd.xlane.f32.xlu0 %v520
    %v522 = vpop.xlane.xlu0 %521
    %v523 = vsel %vm502, 0.0, %v519
    %v524 = vsel %vm503, 0.0, %v522
    %v525 = vlaneseq
    %v526 = vshrl.u32 %v525, 7
    %v527 = vsub.s32 0, %v526
    %v528 = vrot.slane %v510, %v527
    %v529 = vmul.f32 %v523, %v528
    %v530 = vmul.f32 %v524, %v528
    %v531 = vsub.f32 %v511, %v529
    %v532 = vsub.f32 %v512, %v530
    %v533 = vsel %vm502, 1, 0
    %v534 = vsel %vm503, 1, 0
    %vm535 = vcmp.eq.s32.totalorder %v533, 1
    %vm536 = vcmp.eq.s32.totalorder %v534, 1
    %v537 = vsel %vm535, %v528, %v531
    %v538 = vsel %vm536, %v528, %v532
    %539 = vst.msk [vmem:[#allocation2] sm:$0xff] %vm216, %v537
    %540 = vst.msk [vmem:[#allocation2 + $0x8] sm:$0xf] %vm218, %v538
    %vm541 = vcmp.eq.s32.totalorder %v94, 8
    %vm542 = vcmp.eq.s32.totalorder %v108, 8
    %vm543 = vcmp.eq.s32.totalorder %v109, 8
    %v544 = vld [vmem:[#allocation2 + $0x8] sm:$0x1]
    %v545 = vsel %vm541, %v544, 0.0
    %v546 = vsel %vm225, %v545, 0.0
    %547 = vadd.xlane.f32.xlu0 %v546
    %v548 = vpop.xlane.xlu0 %547
    %v549 = vrcp.pop %v548
    %v550 = vmul.f32 %v544, %v549
    %v551 = vld [vmem:[#allocation2] sm:$0xff]
    %v552 = vld [vmem:[#allocation2 + $0x8] sm:$0xf]
    %v553 = vsel %vm541, 1, 0
    %vm554 = vcmp.eq.s32.totalorder %v553, 1
    %v555 = vsel %vm554, %v551, 0.0
    %v556 = vsel %vm554, %v552, 0.0
    %v557 = vsel %vm216, %v555, 0.0
    %558 = vadd.xlane.f32.xlu0 %v557
    %v559 = vpop.xlane.xlu0 %558
    %v560 = vsel %vm218, %v556, 0.0
    %561 = vadd.xlane.f32.xlu0 %v560
    %v562 = vpop.xlane.xlu0 %561
    %v563 = vsel %vm542, 0.0, %v559
    %v564 = vsel %vm543, 0.0, %v562
    %v565 = vlaneseq
    %v566 = vshrl.u32 %v565, 7
    %v567 = vsub.s32 0, %v566
    %v568 = vrot.slane %v550, %v567
    %v569 = vmul.f32 %v563, %v568
    %v570 = vmul.f32 %v564, %v568
    %v571 = vsub.f32 %v551, %v569
    %v572 = vsub.f32 %v552, %v570
    %v573 = vsel %vm542, 1, 0
    %v574 = vsel %vm543, 1, 0
    %vm575 = vcmp.eq.s32.totalorder %v573, 1
    %vm576 = vcmp.eq.s32.totalorder %v574, 1
    %v577 = vsel %vm575, %v568, %v571
    %v578 = vsel %vm576, %v568, %v572
    %579 = vst.msk [vmem:[#allocation2] sm:$0xff] %vm216, %v577
    %580 = vst.msk [vmem:[#allocation2 + $0x8] sm:$0xf] %vm218, %v578
    %vm581 = vcmp.eq.s32.totalorder %v94, 9
    %vm582 = vcmp.eq.s32.totalorder %v108, 9
    %vm583 = vcmp.eq.s32.totalorder %v109, 9
    %v584 = vld [vmem:[#allocation2 + $0x9] sm:$0x1]
    %v585 = vsel %vm581, %v584, 0.0
    %v586 = vsel %vm225, %v585, 0.0
    %587 = vadd.xlane.f32.xlu0 %v586
    %v588 = vpop.xlane.xlu0 %587
    %v589 = vrcp.pop %v588
    %v590 = vmul.f32 %v584, %v589
    %v591 = vld [vmem:[#allocation2] sm:$0xff]
    %v592 = vld [vmem:[#allocation2 + $0x8] sm:$0xf]
    %v593 = vsel %vm581, 1, 0
    %vm594 = vcmp.eq.s32.totalorder %v593, 1
    %v595 = vsel %vm594, %v591, 0.0
    %v596 = vsel %vm594, %v592, 0.0
    %v597 = vsel %vm216, %v595, 0.0
    %598 = vadd.xlane.f32.xlu0 %v597
    %v599 = vpop.xlane.xlu0 %598
    %v600 = vsel %vm218, %v596, 0.0
    %601 = vadd.xlane.f32.xlu0 %v600
    %v602 = vpop.xlane.xlu0 %601
    %v603 = vsel %vm582, 0.0, %v599
    %v604 = vsel %vm583, 0.0, %v602
    %v605 = vlaneseq
    %v606 = vshrl.u32 %v605, 7
    %v607 = vsub.s32 0, %v606
    %v608 = vrot.slane %v590, %v607
    %v609 = vmul.f32 %v603, %v608
    %v610 = vmul.f32 %v604, %v608
    %v611 = vsub.f32 %v591, %v609
    %v612 = vsub.f32 %v592, %v610
    %v613 = vsel %vm582, 1, 0
    %v614 = vsel %vm583, 1, 0
    %vm615 = vcmp.eq.s32.totalorder %v613, 1
    %vm616 = vcmp.eq.s32.totalorder %v614, 1
    %v617 = vsel %vm615, %v608, %v611
    %v618 = vsel %vm616, %v608, %v612
    %619 = vst.msk [vmem:[#allocation2] sm:$0xff] %vm216, %v617
    %620 = vst.msk [vmem:[#allocation2 + $0x8] sm:$0xf] %vm218, %v618
    %vm621 = vcmp.eq.s32.totalorder %v94, 10
    %vm622 = vcmp.eq.s32.totalorder %v108, 10
    %vm623 = vcmp.eq.s32.totalorder %v109, 10
    %v624 = vld [vmem:[#allocation2 + $0xa] sm:$0x1]
    %v625 = vsel %vm621, %v624, 0.0
    %v626 = vsel %vm225, %v625, 0.0
    %627 = vadd.xlane.f32.xlu0 %v626
    %v628 = vpop.xlane.xlu0 %627
    %v629 = vrcp.pop %v628
    %v630 = vmul.f32 %v624, %v629
    %v631 = vld [vmem:[#allocation2] sm:$0xff]
    %v632 = vld [vmem:[#allocation2 + $0x8] sm:$0xf]
    %v633 = vsel %vm621, 1, 0
    %vm634 = vcmp.eq.s32.totalorder %v633, 1
    %v635 = vsel %vm634, %v631, 0.0
    %v636 = vsel %vm634, %v632, 0.0
    %v637 = vsel %vm216, %v635, 0.0
    %638 = vadd.xlane.f32.xlu0 %v637
    %v639 = vpop.xlane.xlu0 %638
    %v640 = vsel %vm218, %v636, 0.0
    %641 = vadd.xlane.f32.xlu0 %v640
    %v642 = vpop.xlane.xlu0 %641
    %v643 = vsel %vm622, 0.0, %v639
    %v644 = vsel %vm623, 0.0, %v642
    %v645 = vlaneseq
    %v646 = vshrl.u32 %v645, 7
    %v647 = vsub.s32 0, %v646
    %v648 = vrot.slane %v630, %v647
    %v649 = vmul.f32 %v643, %v648
    %v650 = vmul.f32 %v644, %v648
    %v651 = vsub.f32 %v631, %v649
    %v652 = vsub.f32 %v632, %v650
    %v653 = vsel %vm622, 1, 0
    %v654 = vsel %vm623, 1, 0
    %vm655 = vcmp.eq.s32.totalorder %v653, 1
    %vm656 = vcmp.eq.s32.totalorder %v654, 1
    %v657 = vsel %vm655, %v648, %v651
    %v658 = vsel %vm656, %v648, %v652
    %659 = vst.msk [vmem:[#allocation2] sm:$0xff] %vm216, %v657
    %660 = vst.msk [vmem:[#allocation2 + $0x8] sm:$0xf] %vm218, %v658
    %vm661 = vcmp.eq.s32.totalorder %v94, 11
    %vm662 = vcmp.eq.s32.totalorder %v108, 11
    %vm663 = vcmp.eq.s32.totalorder %v109, 11
    %v664 = vld [vmem:[#allocation2 + $0xb] sm:$0x1]
    %v665 = vsel %vm661, %v664, 0.0
    %v666 = vsel %vm225, %v665, 0.0
    %667 = vadd.xlane.f32.xlu0 %v666
    %v668 = vpop.xlane.xlu0 %667
    %v669 = vrcp.pop %v668
    %v670 = vmul.f32 %v664, %v669
    %v671 = vld [vmem:[#allocation2] sm:$0xff]
    %v672 = vld [vmem:[#allocation2 + $0x8] sm:$0xf]
    %v673 = vsel %vm661, 1, 0
    %vm674 = vcmp.eq.s32.totalorder %v673, 1
    %v675 = vsel %vm674, %v671, 0.0
    %v676 = vsel %vm674, %v672, 0.0
    %v677 = vsel %vm216, %v675, 0.0
    %678 = vadd.xlane.f32.xlu0 %v677
    %v679 = vpop.xlane.xlu0 %678
    %v680 = vsel %vm218, %v676, 0.0
    %681 = vadd.xlane.f32.xlu0 %v680
    %v682 = vpop.xlane.xlu0 %681
    %v683 = vsel %vm662, 0.0, %v679
    %v684 = vsel %vm663, 0.0, %v682
    %v685 = vlaneseq
    %v686 = vshrl.u32 %v685, 7
    %v687 = vsub.s32 0, %v686
    %v688 = vrot.slane %v670, %v687
    %v689 = vmul.f32 %v683, %v688
    %v690 = vmul.f32 %v684, %v688
    %v691 = vsub.f32 %v671, %v689
    %v692 = vsub.f32 %v672, %v690
    %v693 = vsel %vm662, 1, 0
    %v694 = vsel %vm663, 1, 0
    %vm695 = vcmp.eq.s32.totalorder %v693, 1
    %vm696 = vcmp.eq.s32.totalorder %v694, 1
    %v697 = vsel %vm695, %v688, %v691
    %v698 = vsel %vm696, %v688, %v692
    %699 = vst.msk [vmem:[#allocation2] sm:$0xff] %vm216, %v697
    %700 = vst.msk [vmem:[#allocation2 + $0x8] sm:$0xf] %vm218, %v698
    %v701 = vld [vmem:[#allocation2] sm:$0xff]
    %v702 = vld [vmem:[#allocation2 + $0x8] sm:$0xf]
    %v704 = vsel %vm47, %v90, 0
    %706 = vmatprep.subr.mxu0 0.0
    %707 = vmatpush1.xpose.msra.mxu0 0.0
    %708 = vmatprep.subr.mxu0 0.0
    %709 = vmatpush1.xpose.msra.mxu0 0.0
    %710 = vmatprep.subr.mxu0 0.0
    %711 = vmatpush1.xpose.msra.mxu0 0.0
    %712 = vmatprep.subr.mxu0 0.0
    %713 = vmatpush1.xpose.msra.mxu0 0.0
    %714 = vmatprep.subr.mxu0 0.0
    %715 = vmatpush1.xpose.msra.mxu0 0.0
    %716 = vmatprep.subr.mxu0 0.0
    %717 = vmatpush1.xpose.msra.mxu0 0.0
    %718 = vmatprep.subr.mxu0 0.0
    %719 = vmatpush1.xpose.msra.mxu0 0.0
    %720 = vmatprep.subr.mxu0 0.0
    %721 = vmatpush1.xpose.msra.mxu0 0.0
    %722 = vmatprep.subr.mxu0 0.0
    %723 = vmatpush1.xpose.msra.mxu0 0.0
    %724 = vmatprep.subr.mxu0 0.0
    %725 = vmatpush1.xpose.msra.mxu0 0.0
    %726 = vmatprep.subr.mxu0 0.0
    %727 = vmatpush1.xpose.msra.mxu0 0.0
    %728 = vmatprep.subr.mxu0 0.0
    %729 = vmatpush1.xpose.msra.mxu0 0.0
    %730 = vmatprep.subr.mxu0 0.0
    %731 = vmatpush1.xpose.msra.mxu0 0.0
    %732 = vmatprep.subr.mxu0 0.0
    %733 = vmatpush1.xpose.msra.mxu0 0.0
    %734 = vmatprep.subr.mxu0 0.0
    %735 = vmatpush1.xpose.msra.mxu0 %v128
    %736 = vmatprep.subr.mxu0 0.0
    %737 = vmatpush1.xpose.msra.mxu0 %v125
    %738 = vmatprep.subr.mxu0 0.0
    %739 = vmatpush2.xpose.msra.mxu0 0.0
    %740 = vmatprep.subr.mxu0 0.0
    %741 = vmatpush2.xpose.msra.mxu0 0.0
    %742 = vmatprep.subr.mxu0 0.0
    %743 = vmatpush2.xpose.msra.mxu0 0.0
    %744 = vmatprep.subr.mxu0 0.0
    %745 = vmatpush2.xpose.msra.mxu0 0.0
    %746 = vmatprep.subr.mxu0 0.0
    %747 = vmatpush2.xpose.msra.mxu0 0.0
    %748 = vmatprep.subr.mxu0 0.0
    %749 = vmatpush2.xpose.msra.mxu0 0.0
    %750 = vmatprep.subr.mxu0 0.0
    %751 = vmatpush2.xpose.msra.mxu0 0.0
    %752 = vmatprep.subr.mxu0 0.0
    %753 = vmatpush2.xpose.msra.mxu0 0.0
    %754 = vmatprep.subr.mxu0 0.0
    %755 = vmatpush2.xpose.msra.mxu0 0.0
    %756 = vmatprep.subr.mxu0 0.0
    %757 = vmatpush2.xpose.msra.mxu0 0.0
    %758 = vmatprep.subr.mxu0 0.0
    %759 = vmatpush2.xpose.msra.mxu0 0.0
    %760 = vmatprep.subr.mxu0 0.0
    %761 = vmatpush2.xpose.msra.mxu0 0.0
    %762 = vmatprep.subr.mxu0 0.0
    %763 = vmatpush2.xpose.msra.mxu0 0.0
    %764 = vmatprep.subr.mxu0 0.0
    %765 = vmatpush2.xpose.msra.mxu0 0.0
    %766 = vmatprep.subr.mxu0 0.0
    %767 = vmatpush2.xpose.msra.mxu0 0.0
    %768 = vmatprep.subr.mxu0 0.0
    %769 = vmatpush2.xpose.msra.mxu0 0.0
    %770 = vmatprep.mubr.f32.mxu0 0.0
    %771 = vmatmul.mubr.f32.gmra.mxu0 %v704
    %v772 = vpop.f32.mrf.mxu0
    %v773 = vadd.f32 0.0, %v772
    %v774 = vpop.f32.mrf.mxu0
    %775 = vdwg.mxu0
    %s776 = smul.f32 %s43, 2.3025851
    %v777 = vstv %s776
    %v778 = vmul.f32 %v777, 1.442695
    %v779 = vpow.pop %v778
    %s780 = vtos %v779
    %783 = vrot.lane.b32.xlu0 %v701, 116
    %v784 = vpop.permute.xlu0 %783
    %785 = vrot.lane.b32.xlu0 %v702, 116
    %v786 = vpop.permute.xlu0 %785
    %v789 = vsel %vm213, %v773, 0
    %vm791 = vcmask 1043456
    %v792 = vsel %vm791, %v786, 0
    %794 = vmatprep.subr.mxu0 0.0
    %795 = vmatpush1.msra.mxu0 0.0
    %796 = vmatprep.subr.mxu0 0.0
    %797 = vmatpush1.msra.mxu0 0.0
    %798 = vmatprep.subr.mxu0 0.0
    %799 = vmatpush1.msra.mxu0 0.0
    %800 = vmatprep.subr.mxu0 0.0
    %801 = vmatpush1.msra.mxu0 0.0
    %802 = vmatprep.subr.mxu0 0.0
    %803 = vmatpush1.msra.mxu0 0.0
    %804 = vmatprep.subr.mxu0 0.0
    %805 = vmatpush1.msra.mxu0 0.0
    %806 = vmatprep.subr.mxu0 0.0
    %807 = vmatpush1.msra.mxu0 0.0
    %808 = vmatprep.subr.mxu0 0.0
    %809 = vmatpush1.msra.mxu0 0.0
    %810 = vmatprep.subr.mxu0 0.0
    %811 = vmatpush1.msra.mxu0 0.0
    %812 = vmatprep.subr.mxu0 0.0
    %813 = vmatpush1.msra.mxu0 0.0
    %814 = vmatprep.subr.mxu0 0.0
    %815 = vmatpush1.msra.mxu0 0.0
    %816 = vmatprep.subr.mxu0 0.0
    %817 = vmatpush1.msra.mxu0 0.0
    %818 = vmatprep.subr.mxu0 0.0
    %819 = vmatpush1.msra.mxu0 0.0
    %820 = vmatprep.subr.mxu0 0.0
    %821 = vmatpush1.msra.mxu0 0.0
    %822 = vmatprep.subr.mxu0 0.0
    %823 = vmatpush1.msra.mxu0 %v792
    %824 = vmatprep.subr.mxu0 0.0
    %825 = vmatpush1.msra.mxu0 %v784
    %826 = vmatprep.subr.mxu0 0.0
    %827 = vmatpush2.msra.mxu0 0.0
    %828 = vmatprep.subr.mxu0 0.0
    %829 = vmatpush2.msra.mxu0 0.0
    %830 = vmatprep.subr.mxu0 0.0
    %831 = vmatpush2.msra.mxu0 0.0
    %832 = vmatprep.subr.mxu0 0.0
    %833 = vmatpush2.msra.mxu0 0.0
    %834 = vmatprep.subr.mxu0 0.0
    %835 = vmatpush2.msra.mxu0 0.0
    %836 = vmatprep.subr.mxu0 0.0
    %837 = vmatpush2.msra.mxu0 0.0
    %838 = vmatprep.subr.mxu0 0.0
    %839 = vmatpush2.msra.mxu0 0.0
    %840 = vmatprep.subr.mxu0 0.0
    %841 = vmatpush2.msra.mxu0 0.0
    %842 = vmatprep.subr.mxu0 0.0
    %843 = vmatpush2.msra.mxu0 0.0
    %844 = vmatprep.subr.mxu0 0.0
    %845 = vmatpush2.msra.mxu0 0.0
    %846 = vmatprep.subr.mxu0 0.0
    %847 = vmatpush2.msra.mxu0 0.0
    %848 = vmatprep.subr.mxu0 0.0
    %849 = vmatpush2.msra.mxu0 0.0
    %850 = vmatprep.subr.mxu0 0.0
    %851 = vmatpush2.msra.mxu0 0.0
    %852 = vmatprep.subr.mxu0 0.0
    %853 = vmatpush2.msra.mxu0 0.0
    %854 = vmatprep.subr.mxu0 0.0
    %855 = vmatpush2.msra.mxu0 0.0
    %856 = vmatprep.subr.mxu0 0.0
    %857 = vmatpush2.msra.mxu0 0.0
    %858 = vmatprep.mubr.f32.mxu0 0.0
    %859 = vmatmul.mubr.f32.gmra.mxu0 %v789
    %v860 = vpop.f32.mrf.mxu0
    %v861 = vadd.f32 0.0, %v860
    %v862 = vpop.f32.mrf.mxu0
    %863 = vdwg.mxu0
    %v864 = vstv %s780
    %v865 = vmul.f32 %v864, %v861
    %v866 = vstv %s44
    %v867 = vadd.f32 %v865, %v866
    %vm868 = vcmask 31744
    %869 = vst.msk [vmem:[%s4] sm:$0xff] %vm868, %v867
    // Predicated region
    $region26: #{tpu_custom_call.1} parent=1 // pred_check
      _
    $region27: #{tpu_custom_call.1} parent=1 // pred_check_branch
      %871 = sbr.rel (0) target = $region29
    $region28: #{tpu_custom_call.1} parent=1 // pred_region
      _
    $region29: #{tpu_custom_call.1} parent=1 // pred_fallthru
      _
    // Predicated region
    $region30: #{tpu_custom_call.1} parent=1 // pred_check
      _
    $region31: #{tpu_custom_call.1} parent=1 // pred_check_branch
      %873 = sbr.rel (0) target = $region33
    $region32: #{tpu_custom_call.1} parent=1 // pred_region
      _
    $region33: #{tpu_custom_call.1} parent=1 // pred_fallthru
      _
    %874 = vsyncpa [#allocation4], 1
    %875 = vsyncpa [#allocation5], 1

</llo_original>
